<compile_context>
chip_gen: v7x
topology: tpu7x:2x2x1
jax: 0.10.0
libtpu: 0.0.40
codegen_flags: <defaults>
</compile_context>

<pallas_src>
import functools

import jax
import jax.numpy as jnp
import numpy as np
from jax import lax
from jax.experimental import pallas as pl
from jax.experimental.pallas import tpu as pltpu

EPS = 1e-5          # nn.BatchNorm2d default eps
NEG_SLOPE = 0.1     # activation = nn.LeakyReLU(0.1) (convlarge)
LANE = 128          # TPU lane width


def _conv_stats_kernel(x_ref, w_ref, mask_ref, y_ref, s_ref, ss_ref, *,
                       kernel_h, kernel_w, wp, qlen):
    """Pass 1 (per image): implicit-im2col conv + per-image BN partial stats.

    x_ref   : (1, Cin, Lpad)      bf16  flattened padded NCHW image
    w_ref   : (KH*KW, Cout, Cin)  bf16  per-tap conv weights (channel-major)
    mask_ref: (1, Qlen)           f32   1.0 on real output columns, 0.0 on the
                                        Wp-W "garbage" columns of the band
    y_ref   : (1, Cout, Qlen)     bf16  channel-major conv output band
    s_ref / ss_ref : (1, Cout, 1) f32   per-image channel sum / sum-of-squares
    """
    acc = None
    for kh in range(kernel_h):
        for kw in range(kernel_w):
            t = kh * kernel_w + kw
            off = kh * wp + kw                       # static tap offset
            xs = x_ref[0, :, off:off + qlen]         # (Cin, Qlen) bf16
            d = jnp.dot(w_ref[t], xs, preferred_element_type=jnp.float32)
            acc = d if acc is None else acc + d      # (Cout, Qlen) f32

    # bf16 intermediate (stats taken from the f32 accumulator first).
    y_ref[0] = acc.astype(y_ref.dtype)

    yv = acc * mask_ref[...]                         # zero out garbage columns
    s_ref[0] = jnp.sum(yv, axis=1, keepdims=True)          # (Cout, 1)
    ss_ref[0] = jnp.sum(yv * acc, axis=1, keepdims=True)   # (Cout, 1)


def _bn_act_kernel(y_ref, scale_ref, shift_ref, o_ref, *, w_valid):
    """Pass 2 (per image): folded BN affine + LeakyReLU, crop W padding,
    write the NCHW output block directly (no wrapper-side transpose/slice)."""
    y = y_ref[0][:, :, :w_valid].astype(jnp.float32)        # (Cout, H, W)
    z = y * scale_ref[...] + shift_ref[...]                 # (Cout,1,1) bcast
    o_ref[0] = jnp.where(z >= 0, z, NEG_SLOPE * z).astype(o_ref.dtype)


@functools.partial(jax.jit, static_argnames=("padding",))
def cnn_block_forward(x_nchw, weight, bias, gamma, beta, *, padding=1):
    """Forward of CNN_block.  x_nchw: [N, Cin, H, W] (PyTorch layout)."""
    # Conv bias cancels exactly under training-mode BatchNorm (the batch mean
    # absorbs it), so `bias` is intentionally unused by the kernels.
    del bias

    N, Cin, H, W = x_nchw.shape
    Cout, _, KH, KW = weight.shape
    assert 2 * padding == KH - 1 and 2 * padding == KW - 1, "same-conv only"

    Hp, Wp = H + 2 * padding, W + 2 * padding
    L = Hp * Wp                                  # flattened padded image len
    Qlen = H * Wp                                # output band (incl. garbage)
    need = Qlen + (KH - 1) * Wp + (KW - 1)       # max flat read index + 1
    Lpad = pl.cdiv(max(need, L), LANE) * LANE
    T = KH * KW
    M = N * H * W                                # valid elements per channel

    # ---- glue: pad spatial dims, flatten, cast bf16 (one cheap XLA pass) ----
    xp = jnp.pad(x_nchw.astype(jnp.float32),
                 ((0, 0), (0, 0), (padding, padding), (padding, padding)))
    xflat = xp.reshape(N, Cin, L)
    xflat = jnp.pad(xflat, ((0, 0), (0, 0), (0, Lpad - L))).astype(jnp.bfloat16)

    # PyTorch conv weight [Cout, Cin, KH, KW] -> per-tap [T, Cout, Cin].
    w_taps = jnp.transpose(weight.astype(jnp.float32), (2, 3, 0, 1))
    w_taps = w_taps.reshape(T, Cout, Cin).astype(jnp.bfloat16)

    # Validity mask over the flattened band (drop columns w' in [W, Wp)).
    q = jnp.arange(Qlen)
    mask = ((q % Wp) < W).astype(jnp.float32).reshape(1, Qlen)

    # ---- pass 1: implicit-im2col conv + per-image BN partial statistics ----
    cost = pl.CostEstimate(
        flops=2 * N * T * Cin * Cout * Qlen,
        transcendentals=0,
        bytes_accessed=(xflat.size * 2 + N * w_taps.size * 2
                        + N * Cout * Qlen * 2 + 2 * N * Cout * 4))

    # Per-step VMEM estimate (double-buffered blocks + resident weights);
    # only raise the scoped limit when it is actually needed (v5e: 16 MiB
    # default; keep below v7x's 64 MiB physical).
    vmem_est = (2 * (Cin * Lpad * 2 + Cout * Qlen * 2 + 2 * Cout * 4)
                + T * Cout * Cin * 2 + Qlen * 4)
    vmem_limit = (int(min(3 * vmem_est, 48 * 1024 * 1024))
                  if vmem_est > 12 * 1024 * 1024 else None)

    pass1 = pl.pallas_call(
        functools.partial(_conv_stats_kernel, kernel_h=KH, kernel_w=KW,
                          wp=Wp, qlen=Qlen),
        out_shape=(
            jax.ShapeDtypeStruct((N, Cout, Qlen), jnp.bfloat16),   # y (bf16)
            jax.ShapeDtypeStruct((N, Cout, 1), jnp.float32),       # sum
            jax.ShapeDtypeStruct((N, Cout, 1), jnp.float32),       # sum sq
        ),
        grid_spec=pltpu.PrefetchScalarGridSpec(
            num_scalar_prefetch=0,
            grid=(N,),
            in_specs=[
                pl.BlockSpec((1, Cin, Lpad), lambda n: (n, 0, 0)),
                pl.BlockSpec((T, Cout, Cin), lambda n: (0, 0, 0)),
                pl.BlockSpec((1, Qlen), lambda n: (0, 0)),
            ],
            out_specs=[
                pl.BlockSpec((1, Cout, Qlen), lambda n: (n, 0, 0)),
                pl.BlockSpec((1, Cout, 1), lambda n: (n, 0, 0)),
                pl.BlockSpec((1, Cout, 1), lambda n: (n, 0, 0)),
            ],
        ),
        compiler_params=pltpu.CompilerParams(
            dimension_semantics=("parallel",),
            vmem_limit_bytes=vmem_limit),
        cost_estimate=cost,
    )
    y_flat, s_part, ss_part = pass1(xflat, w_taps, mask)

    # ---- finalize global BN stats (tiny [Cout] math, f32) ----
    s = jnp.sum(s_part[:, :, 0], axis=0)
    ss = jnp.sum(ss_part[:, :, 0], axis=0)
    mean = s / M
    var = jnp.maximum(ss / M - mean * mean, 0.0)        # biased variance
    inv = lax.rsqrt(var + EPS)
    g = gamma.astype(jnp.float32)
    scale = (g * inv).reshape(Cout, 1, 1)
    shift = (beta.astype(jnp.float32) - mean * g * inv).reshape(Cout, 1, 1)

    # ---- pass 2: BN affine + LeakyReLU, crop W padding, emit NCHW ----
    y4 = y_flat.reshape(N, Cout, H, Wp)                 # free row-major split
    pass2 = pl.pallas_call(
        functools.partial(_bn_act_kernel, w_valid=W),
        out_shape=jax.ShapeDtypeStruct((N, Cout, H, W), jnp.float32),
        grid_spec=pltpu.PrefetchScalarGridSpec(
            num_scalar_prefetch=0,
            grid=(N,),
            in_specs=[
                pl.BlockSpec((1, Cout, H, Wp), lambda n: (n, 0, 0, 0)),
                pl.BlockSpec((Cout, 1, 1), lambda n: (0, 0, 0)),
                pl.BlockSpec((Cout, 1, 1), lambda n: (0, 0, 0)),
            ],
            out_specs=pl.BlockSpec((1, Cout, H, W), lambda n: (n, 0, 0, 0)),
        ),
        compiler_params=pltpu.CompilerParams(
            dimension_semantics=("parallel",)),
    )
    return pass2(y4, scale, shift)      # already NCHW, no post-processing


def _reference_forward(x_nchw, weight, bias, gamma, beta, padding=1):
    """Pure-JAX f32 reference matching PyTorch semantics (for verification)."""
    y = lax.conv_general_dilated(
        x_nchw.astype(jnp.float32), weight.astype(jnp.float32),
        window_strides=(1, 1), padding=((padding, padding), (padding, padding)),
        dimension_numbers=("NCHW", "OIHW", "NCHW"))
    y = y + bias[None, :, None, None]
    mean = jnp.mean(y, axis=(0, 2, 3), keepdims=True)
    var = jnp.mean(jnp.square(y - mean), axis=(0, 2, 3), keepdims=True)
    y_hat = (y - mean) * lax.rsqrt(var + EPS)
    z = y_hat * gamma[None, :, None, None] + beta[None, :, None, None]
    return jnp.where(z >= 0, z, NEG_SLOPE * z)


if __name__ == "__main__":
    # CNN_block(in_plane=4, out_plane=8, kernel_size=3, padding=1,
    #           activation=nn.LeakyReLU(0.1))
    N, Cin, H, W = 2, 4, 16, 16
    Cout, K, PAD = 8, 3, 1

    key = jax.random.PRNGKey(0)
    kw_, kb_, kg_, kbe_, kx_ = jax.random.split(key, 5)
    bound = 1.0 / np.sqrt(Cin * K * K)
    weight = jax.random.uniform(kw_, (Cout, Cin, K, K), jnp.float32, -bound, bound)
    bias = jax.random.uniform(kb_, (Cout,), jnp.float32, -bound, bound)
    gamma = 1.0 + 0.1 * jax.random.normal(kg_, (Cout,), jnp.float32)
    beta = 0.1 * jax.random.normal(kbe_, (Cout,), jnp.float32)
    x = jax.random.normal(kx_, (N, Cin, H, W), jnp.float32)

    out = cnn_block_forward(x, weight, bias, gamma, beta, padding=PAD)
    out = jax.block_until_ready(out)

    ref = jax.block_until_ready(
        _reference_forward(x, weight, bias, gamma, beta, padding=PAD))

    assert out.shape == (N, Cout, H, W), out.shape
    # bf16 matmul inputs + bf16 intermediate y (f32 accumulation / BN math)
    # -> relaxed tolerance vs the f32 reference.
    np.testing.assert_allclose(np.asarray(out), np.asarray(ref),
                               rtol=4e-2, atol=4e-2)
    print("KERNEL_OK")
</pallas_src>

<mosaic_0001>
module attributes {stable_mosaic.version = 11 : i64} {
  func.func @_bn_act_kernel(%arg0: i32, %arg1: memref<1x8x16x18xbf16, #tpu.memory_space<vmem>>, %arg2: memref<8x1x1xf32, #tpu.memory_space<vmem>>, %arg3: memref<8x1x1xf32, #tpu.memory_space<vmem>>, %arg4: memref<1x8x16x16xf32, #tpu.memory_space<vmem>>) attributes {dimension_semantics = [#tpu.dimension_semantics<parallel>], iteration_bounds = array<i64: 2>, scalar_prefetch = 0 : i64, scratch_operands = 0 : i64, tpu.core_type = #tpu.core_type<tc>, window_params = [{transform_indices = @transform_0, window_bounds = array<i64: 1, 8, 16, 18>}, {pipeline_mode = #tpu.pipeline_mode<synchronous>, transform_indices = @transform_1, window_bounds = array<i64: 8, 1, 1>}, {pipeline_mode = #tpu.pipeline_mode<synchronous>, transform_indices = @transform_2, window_bounds = array<i64: 8, 1, 1>}, {transform_indices = @transform_3, window_bounds = array<i64: 1, 8, 16, 16>}]} {
    %c0 = arith.constant 0 : index
    %c0_0 = arith.constant 0 : index
    %c0_1 = arith.constant 0 : index
    %c0_2 = arith.constant 0 : index
    %0 = vector.load %arg1[%c0, %c0_0, %c0_1, %c0_2] : memref<1x8x16x18xbf16, #tpu.memory_space<vmem>>, vector<1x8x16x18xbf16>
    %1 = vector.shape_cast %0 : vector<1x8x16x18xbf16> to vector<8x16x18xbf16>
    %2 = vector.extract_strided_slice %1 {offsets = [0, 0, 0], sizes = [8, 16, 16], strides = [1, 1, 1]} : vector<8x16x18xbf16> to vector<8x16x16xbf16>
    %3 = arith.extf %2 : vector<8x16x16xbf16> to vector<8x16x16xf32>
    %c0_3 = arith.constant 0 : index
    %c0_4 = arith.constant 0 : index
    %c0_5 = arith.constant 0 : index
    %4 = vector.load %arg2[%c0_3, %c0_4, %c0_5] : memref<8x1x1xf32, #tpu.memory_space<vmem>>, vector<8x1x1xf32>
    %5 = vector.broadcast %4 : vector<8x1x1xf32> to vector<8x16x16xf32>
    %6 = arith.mulf %3, %5 : vector<8x16x16xf32>
    %c0_6 = arith.constant 0 : index
    %c0_7 = arith.constant 0 : index
    %c0_8 = arith.constant 0 : index
    %7 = vector.load %arg3[%c0_6, %c0_7, %c0_8] : memref<8x1x1xf32, #tpu.memory_space<vmem>>, vector<8x1x1xf32>
    %8 = vector.broadcast %7 : vector<8x1x1xf32> to vector<8x16x16xf32>
    %9 = arith.addf %6, %8 : vector<8x16x16xf32>
    %cst = arith.constant 0.000000e+00 : f32
    %10 = vector.broadcast %cst : f32 to vector<8x16x16xf32>
    %11 = arith.cmpf oge, %9, %10 : vector<8x16x16xf32>
    %cst_9 = arith.constant 1.000000e-01 : f32
    %12 = vector.broadcast %cst_9 : f32 to vector<8x16x16xf32>
    %13 = arith.mulf %12, %9 : vector<8x16x16xf32>
    %14 = arith.select %11, %9, %13 : vector<8x16x16xi1>, vector<8x16x16xf32>
    %c0_10 = arith.constant 0 : index
    %c0_11 = arith.constant 0 : index
    %c0_12 = arith.constant 0 : index
    %c0_13 = arith.constant 0 : index
    %15 = vector.load %arg4[%c0_10, %c0_11, %c0_12, %c0_13] : memref<1x8x16x16xf32, #tpu.memory_space<vmem>>, vector<1x8x16x16xf32>
    %16 = vector.shape_cast %15 : vector<1x8x16x16xf32> to vector<8x16x16xf32>
    %17 = vector.shape_cast %14 : vector<8x16x16xf32> to vector<1x8x16x16xf32>
    tpu.vector_store %arg4[%c0_10, %c0_11, %c0_12, %c0_13], %17 {strides = array<i32>} : memref<1x8x16x16xf32, #tpu.memory_space<vmem>>, vector<1x8x16x16xf32>,
    return
  }
  func.func @transform_0(%arg0: i32) -> (i32, i32, i32, i32) {
    %c0_i32 = arith.constant 0 : i32
    %c0_i32_0 = arith.constant 0 : i32
    %c0_i32_1 = arith.constant 0 : i32
    %c0_i32_2 = arith.constant 0 : i32
    return %arg0, %c0_i32, %c0_i32_0, %c0_i32_1 : i32, i32, i32, i32
  }
  func.func @transform_1(%arg0: i32) -> (i32, i32, i32) {
    %c0_i32 = arith.constant 0 : i32
    %c0_i32_0 = arith.constant 0 : i32
    %c0_i32_1 = arith.constant 0 : i32
    %c0_i32_2 = arith.constant 0 : i32
    return %c0_i32, %c0_i32_0, %c0_i32_1 : i32, i32, i32
  }
  func.func @transform_2(%arg0: i32) -> (i32, i32, i32) {
    %c0_i32 = arith.constant 0 : i32
    %c0_i32_0 = arith.constant 0 : i32
    %c0_i32_1 = arith.constant 0 : i32
    %c0_i32_2 = arith.constant 0 : i32
    return %c0_i32, %c0_i32_0, %c0_i32_1 : i32, i32, i32
  }
  func.func @transform_3(%arg0: i32) -> (i32, i32, i32, i32) {
    %c0_i32 = arith.constant 0 : i32
    %c0_i32_0 = arith.constant 0 : i32
    %c0_i32_1 = arith.constant 0 : i32
    %c0_i32_2 = arith.constant 0 : i32
    return %arg0, %c0_i32, %c0_i32_0, %c0_i32_1 : i32, i32, i32, i32
  }
}

module attributes {stable_mosaic.version = 11 : i64} {
  func.func @_conv_stats_kernel(%arg0: i32, %arg1: memref<1x4x384xbf16, #tpu.memory_space<vmem>>, %arg2: memref<9x8x4xbf16, #tpu.memory_space<vmem>>, %arg3: memref<1x288xf32, #tpu.memory_space<vmem>>, %arg4: memref<1x8x288xbf16, #tpu.memory_space<vmem>>, %arg5: memref<1x8x1xf32, #tpu.memory_space<vmem>>, %arg6: memref<1x8x1xf32, #tpu.memory_space<vmem>>) attributes {dimension_semantics = [#tpu.dimension_semantics<parallel>], iteration_bounds = array<i64: 2>, scalar_prefetch = 0 : i64, scratch_operands = 0 : i64, tpu.core_type = #tpu.core_type<tc>, window_params = [{transform_indices = @transform_0, window_bounds = array<i64: 1, 4, 384>}, {pipeline_mode = #tpu.pipeline_mode<synchronous>, transform_indices = @transform_1, window_bounds = array<i64: 9, 8, 4>}, {pipeline_mode = #tpu.pipeline_mode<synchronous>, transform_indices = @transform_2, window_bounds = array<i64: 1, 288>}, {transform_indices = @transform_3, window_bounds = array<i64: 1, 8, 288>}, {transform_indices = @transform_4, window_bounds = array<i64: 1, 8, 1>}, {transform_indices = @transform_5, window_bounds = array<i64: 1, 8, 1>}]} {
    %c0 = arith.constant 0 : index
    %c0_0 = arith.constant 0 : index
    %c0_1 = arith.constant 0 : index
    %0 = vector.load %arg1[%c0, %c0_0, %c0_1] : memref<1x4x384xbf16, #tpu.memory_space<vmem>>, vector<1x4x288xbf16>
    %1 = vector.shape_cast %0 : vector<1x4x288xbf16> to vector<4x288xbf16>
    %c0_2 = arith.constant 0 : index
    %c0_3 = arith.constant 0 : index
    %c0_4 = arith.constant 0 : index
    %2 = vector.load %arg2[%c0_2, %c0_3, %c0_4] : memref<9x8x4xbf16, #tpu.memory_space<vmem>>, vector<1x8x4xbf16>
    %3 = vector.shape_cast %2 : vector<1x8x4xbf16> to vector<8x4xbf16>
    %cst = arith.constant dense<0.000000e+00> : vector<8x288xf32>
    %4 = tpu.matmul %3, %1, %cst {dimension_numbers = #tpu.dot_dimension_numbers<[1], [0], [0], [1], [0, 0, 1, 1], [], []>} : vector<8x4xbf16>, vector<4x288xbf16>, vector<8x288xf32> -> vector<8x288xf32>
    %c0_5 = arith.constant 0 : index
    %c0_6 = arith.constant 0 : index
    %c1 = arith.constant 1 : index
    %5 = vector.load %arg1[%c0_5, %c0_6, %c1] : memref<1x4x384xbf16, #tpu.memory_space<vmem>>, vector<1x4x288xbf16>
    %6 = vector.shape_cast %5 : vector<1x4x288xbf16> to vector<4x288xbf16>
    %c1_7 = arith.constant 1 : index
    %c0_8 = arith.constant 0 : index
    %c0_9 = arith.constant 0 : index
    %7 = vector.load %arg2[%c1_7, %c0_8, %c0_9] : memref<9x8x4xbf16, #tpu.memory_space<vmem>>, vector<1x8x4xbf16>
    %8 = vector.shape_cast %7 : vector<1x8x4xbf16> to vector<8x4xbf16>
    %cst_10 = arith.constant dense<0.000000e+00> : vector<8x288xf32>
    %9 = tpu.matmul %8, %6, %cst_10 {dimension_numbers = #tpu.dot_dimension_numbers<[1], [0], [0], [1], [0, 0, 1, 1], [], []>} : vector<8x4xbf16>, vector<4x288xbf16>, vector<8x288xf32> -> vector<8x288xf32>
    %10 = arith.addf %4, %9 : vector<8x288xf32>
    %c0_11 = arith.constant 0 : index
    %c0_12 = arith.constant 0 : index
    %c2 = arith.constant 2 : index
    %11 = vector.load %arg1[%c0_11, %c0_12, %c2] : memref<1x4x384xbf16, #tpu.memory_space<vmem>>, vector<1x4x288xbf16>
    %12 = vector.shape_cast %11 : vector<1x4x288xbf16> to vector<4x288xbf16>
    %c2_13 = arith.constant 2 : index
    %c0_14 = arith.constant 0 : index
    %c0_15 = arith.constant 0 : index
    %13 = vector.load %arg2[%c2_13, %c0_14, %c0_15] : memref<9x8x4xbf16, #tpu.memory_space<vmem>>, vector<1x8x4xbf16>
    %14 = vector.shape_cast %13 : vector<1x8x4xbf16> to vector<8x4xbf16>
    %cst_16 = arith.constant dense<0.000000e+00> : vector<8x288xf32>
    %15 = tpu.matmul %14, %12, %cst_16 {dimension_numbers = #tpu.dot_dimension_numbers<[1], [0], [0], [1], [0, 0, 1, 1], [], []>} : vector<8x4xbf16>, vector<4x288xbf16>, vector<8x288xf32> -> vector<8x288xf32>
    %16 = arith.addf %10, %15 : vector<8x288xf32>
    %c0_17 = arith.constant 0 : index
    %c0_18 = arith.constant 0 : index
    %c18 = arith.constant 18 : index
    %17 = vector.load %arg1[%c0_17, %c0_18, %c18] : memref<1x4x384xbf16, #tpu.memory_space<vmem>>, vector<1x4x288xbf16>
    %18 = vector.shape_cast %17 : vector<1x4x288xbf16> to vector<4x288xbf16>
    %c3 = arith.constant 3 : index
    %c0_19 = arith.constant 0 : index
    %c0_20 = arith.constant 0 : index
    %19 = vector.load %arg2[%c3, %c0_19, %c0_20] : memref<9x8x4xbf16, #tpu.memory_space<vmem>>, vector<1x8x4xbf16>
    %20 = vector.shape_cast %19 : vector<1x8x4xbf16> to vector<8x4xbf16>
    %cst_21 = arith.constant dense<0.000000e+00> : vector<8x288xf32>
    %21 = tpu.matmul %20, %18, %cst_21 {dimension_numbers = #tpu.dot_dimension_numbers<[1], [0], [0], [1], [0, 0, 1, 1], [], []>} : vector<8x4xbf16>, vector<4x288xbf16>, vector<8x288xf32> -> vector<8x288xf32>
    %22 = arith.addf %16, %21 : vector<8x288xf32>
    %c0_22 = arith.constant 0 : index
    %c0_23 = arith.constant 0 : index
    %c19 = arith.constant 19 : index
    %23 = vector.load %arg1[%c0_22, %c0_23, %c19] : memref<1x4x384xbf16, #tpu.memory_space<vmem>>, vector<1x4x288xbf16>
    %24 = vector.shape_cast %23 : vector<1x4x288xbf16> to vector<4x288xbf16>
    %c4 = arith.constant 4 : index
    %c0_24 = arith.constant 0 : index
    %c0_25 = arith.constant 0 : index
    %25 = vector.load %arg2[%c4, %c0_24, %c0_25] : memref<9x8x4xbf16, #tpu.memory_space<vmem>>, vector<1x8x4xbf16>
    %26 = vector.shape_cast %25 : vector<1x8x4xbf16> to vector<8x4xbf16>
    %cst_26 = arith.constant dense<0.000000e+00> : vector<8x288xf32>
    %27 = tpu.matmul %26, %24, %cst_26 {dimension_numbers = #tpu.dot_dimension_numbers<[1], [0], [0], [1], [0, 0, 1, 1], [], []>} : vector<8x4xbf16>, vector<4x288xbf16>, vector<8x288xf32> -> vector<8x288xf32>
    %28 = arith.addf %22, %27 : vector<8x288xf32>
    %c0_27 = arith.constant 0 : index
    %c0_28 = arith.constant 0 : index
    %c20 = arith.constant 20 : index
    %29 = vector.load %arg1[%c0_27, %c0_28, %c20] : memref<1x4x384xbf16, #tpu.memory_space<vmem>>, vector<1x4x288xbf16>
    %30 = vector.shape_cast %29 : vector<1x4x288xbf16> to vector<4x288xbf16>
    %c5 = arith.constant 5 : index
    %c0_29 = arith.constant 0 : index
    %c0_30 = arith.constant 0 : index
    %31 = vector.load %arg2[%c5, %c0_29, %c0_30] : memref<9x8x4xbf16, #tpu.memory_space<vmem>>, vector<1x8x4xbf16>
    %32 = vector.shape_cast %31 : vector<1x8x4xbf16> to vector<8x4xbf16>
    %cst_31 = arith.constant dense<0.000000e+00> : vector<8x288xf32>
    %33 = tpu.matmul %32, %30, %cst_31 {dimension_numbers = #tpu.dot_dimension_numbers<[1], [0], [0], [1], [0, 0, 1, 1], [], []>} : vector<8x4xbf16>, vector<4x288xbf16>, vector<8x288xf32> -> vector<8x288xf32>
    %34 = arith.addf %28, %33 : vector<8x288xf32>
    %c0_32 = arith.constant 0 : index
    %c0_33 = arith.constant 0 : index
    %c36 = arith.constant 36 : index
    %35 = vector.load %arg1[%c0_32, %c0_33, %c36] : memref<1x4x384xbf16, #tpu.memory_space<vmem>>, vector<1x4x288xbf16>
    %36 = vector.shape_cast %35 : vector<1x4x288xbf16> to vector<4x288xbf16>
    %c6 = arith.constant 6 : index
    %c0_34 = arith.constant 0 : index
    %c0_35 = arith.constant 0 : index
    %37 = vector.load %arg2[%c6, %c0_34, %c0_35] : memref<9x8x4xbf16, #tpu.memory_space<vmem>>, vector<1x8x4xbf16>
    %38 = vector.shape_cast %37 : vector<1x8x4xbf16> to vector<8x4xbf16>
    %cst_36 = arith.constant dense<0.000000e+00> : vector<8x288xf32>
    %39 = tpu.matmul %38, %36, %cst_36 {dimension_numbers = #tpu.dot_dimension_numbers<[1], [0], [0], [1], [0, 0, 1, 1], [], []>} : vector<8x4xbf16>, vector<4x288xbf16>, vector<8x288xf32> -> vector<8x288xf32>
    %40 = arith.addf %34, %39 : vector<8x288xf32>
    %c0_37 = arith.constant 0 : index
    %c0_38 = arith.constant 0 : index
    %c37 = arith.constant 37 : index
    %41 = vector.load %arg1[%c0_37, %c0_38, %c37] : memref<1x4x384xbf16, #tpu.memory_space<vmem>>, vector<1x4x288xbf16>
    %42 = vector.shape_cast %41 : vector<1x4x288xbf16> to vector<4x288xbf16>
    %c7 = arith.constant 7 : index
    %c0_39 = arith.constant 0 : index
    %c0_40 = arith.constant 0 : index
    %43 = vector.load %arg2[%c7, %c0_39, %c0_40] : memref<9x8x4xbf16, #tpu.memory_space<vmem>>, vector<1x8x4xbf16>
    %44 = vector.shape_cast %43 : vector<1x8x4xbf16> to vector<8x4xbf16>
    %cst_41 = arith.constant dense<0.000000e+00> : vector<8x288xf32>
    %45 = tpu.matmul %44, %42, %cst_41 {dimension_numbers = #tpu.dot_dimension_numbers<[1], [0], [0], [1], [0, 0, 1, 1], [], []>} : vector<8x4xbf16>, vector<4x288xbf16>, vector<8x288xf32> -> vector<8x288xf32>
    %46 = arith.addf %40, %45 : vector<8x288xf32>
    %c0_42 = arith.constant 0 : index
    %c0_43 = arith.constant 0 : index
    %c38 = arith.constant 38 : index
    %47 = vector.load %arg1[%c0_42, %c0_43, %c38] : memref<1x4x384xbf16, #tpu.memory_space<vmem>>, vector<1x4x288xbf16>
    %48 = vector.shape_cast %47 : vector<1x4x288xbf16> to vector<4x288xbf16>
    %c8 = arith.constant 8 : index
    %c0_44 = arith.constant 0 : index
    %c0_45 = arith.constant 0 : index
    %49 = vector.load %arg2[%c8, %c0_44, %c0_45] : memref<9x8x4xbf16, #tpu.memory_space<vmem>>, vector<1x8x4xbf16>
    %50 = vector.shape_cast %49 : vector<1x8x4xbf16> to vector<8x4xbf16>
    %cst_46 = arith.constant dense<0.000000e+00> : vector<8x288xf32>
    %51 = tpu.matmul %50, %48, %cst_46 {dimension_numbers = #tpu.dot_dimension_numbers<[1], [0], [0], [1], [0, 0, 1, 1], [], []>} : vector<8x4xbf16>, vector<4x288xbf16>, vector<8x288xf32> -> vector<8x288xf32>
    %52 = arith.addf %46, %51 : vector<8x288xf32>
    %53 = arith.truncf %52 : vector<8x288xf32> to vector<8x288xbf16>
    %c0_47 = arith.constant 0 : index
    %c0_48 = arith.constant 0 : index
    %c0_49 = arith.constant 0 : index
    %54 = vector.load %arg4[%c0_47, %c0_48, %c0_49] : memref<1x8x288xbf16, #tpu.memory_space<vmem>>, vector<1x8x288xbf16>
    %55 = vector.shape_cast %54 : vector<1x8x288xbf16> to vector<8x288xbf16>
    %56 = vector.shape_cast %53 : vector<8x288xbf16> to vector<1x8x288xbf16>
    tpu.vector_store %arg4[%c0_47, %c0_48, %c0_49], %56 {strides = array<i32>} : memref<1x8x288xbf16, #tpu.memory_space<vmem>>, vector<1x8x288xbf16>,
    %c0_50 = arith.constant 0 : index
    %c0_51 = arith.constant 0 : index
    %57 = vector.load %arg3[%c0_50, %c0_51] : memref<1x288xf32, #tpu.memory_space<vmem>>, vector<1x288xf32>
    %58 = vector.broadcast %57 : vector<1x288xf32> to vector<8x288xf32>
    %59 = arith.mulf %52, %58 : vector<8x288xf32>
    %cst_52 = arith.constant dense<0.000000e+00> : vector<8xf32>
    %60 = vector.multi_reduction <add>, %59, %cst_52 [1] : vector<8x288xf32> to vector<8xf32>
    %61 = vector.shape_cast %60 : vector<8xf32> to vector<8x1xf32>
    %c0_53 = arith.constant 0 : index
    %c0_54 = arith.constant 0 : index
    %c0_55 = arith.constant 0 : index
    %62 = vector.load %arg5[%c0_53, %c0_54, %c0_55] : memref<1x8x1xf32, #tpu.memory_space<vmem>>, vector<1x8x1xf32>
    %63 = vector.shape_cast %62 : vector<1x8x1xf32> to vector<8x1xf32>
    %64 = vector.shape_cast %61 : vector<8x1xf32> to vector<1x8x1xf32>
    tpu.vector_store %arg5[%c0_53, %c0_54, %c0_55], %64 {strides = array<i32>} : memref<1x8x1xf32, #tpu.memory_space<vmem>>, vector<1x8x1xf32>,
    %65 = arith.mulf %59, %52 : vector<8x288xf32>
    %cst_56 = arith.constant dense<0.000000e+00> : vector<8xf32>
    %66 = vector.multi_reduction <add>, %65, %cst_56 [1] : vector<8x288xf32> to vector<8xf32>
    %67 = vector.shape_cast %66 : vector<8xf32> to vector<8x1xf32>
    %c0_57 = arith.constant 0 : index
    %c0_58 = arith.constant 0 : index
    %c0_59 = arith.constant 0 : index
    %68 = vector.load %arg6[%c0_57, %c0_58, %c0_59] : memref<1x8x1xf32, #tpu.memory_space<vmem>>, vector<1x8x1xf32>
    %69 = vector.shape_cast %68 : vector<1x8x1xf32> to vector<8x1xf32>
    %70 = vector.shape_cast %67 : vector<8x1xf32> to vector<1x8x1xf32>
    tpu.vector_store %arg6[%c0_57, %c0_58, %c0_59], %70 {strides = array<i32>} : memref<1x8x1xf32, #tpu.memory_space<vmem>>, vector<1x8x1xf32>,
    return
  }
  func.func @transform_0(%arg0: i32) -> (i32, i32, i32) {
    %c0_i32 = arith.constant 0 : i32
    %c0_i32_0 = arith.constant 0 : i32
    %c0_i32_1 = arith.constant 0 : i32
    return %arg0, %c0_i32, %c0_i32_0 : i32, i32, i32
  }
  func.func @transform_1(%arg0: i32) -> (i32, i32, i32) {
    %c0_i32 = arith.constant 0 : i32
    %c0_i32_0 = arith.constant 0 : i32
    %c0_i32_1 = arith.constant 0 : i32
    %c0_i32_2 = arith.constant 0 : i32
    return %c0_i32, %c0_i32_0, %c0_i32_1 : i32, i32, i32
  }
  func.func @transform_2(%arg0: i32) -> (i32, i32) {
    %c0_i32 = arith.constant 0 : i32
    %c0_i32_0 = arith.constant 0 : i32
    %c0_i32_1 = arith.constant 0 : i32
    return %c0_i32, %c0_i32_0 : i32, i32
  }
  func.func @transform_3(%arg0: i32) -> (i32, i32, i32) {
    %c0_i32 = arith.constant 0 : i32
    %c0_i32_0 = arith.constant 0 : i32
    %c0_i32_1 = arith.constant 0 : i32
    return %arg0, %c0_i32, %c0_i32_0 : i32, i32, i32
  }
  func.func @transform_4(%arg0: i32) -> (i32, i32, i32) {
    %c0_i32 = arith.constant 0 : i32
    %c0_i32_0 = arith.constant 0 : i32
    %c0_i32_1 = arith.constant 0 : i32
    return %arg0, %c0_i32, %c0_i32_0 : i32, i32, i32
  }
  func.func @transform_5(%arg0: i32) -> (i32, i32, i32) {
    %c0_i32 = arith.constant 0 : i32
    %c0_i32_0 = arith.constant 0 : i32
    %c0_i32_1 = arith.constant 0 : i32
    return %arg0, %c0_i32, %c0_i32_0 : i32, i32, i32
  }
}

</mosaic_0001>

<llo_original>
// kernel: cnn_block_forward.3
$region0: #{cnn_block_forward.3}
  #allocation0 [shape = 'u32[]', space=smem, size = 0x4, offset = 0x4, fixed_abs, tag = 'smem constant byte address 0x4 - core index']
  #allocation1 [shape = 'u32[144,128]{1,0:T(1,128)}', space=vmem, size = 0x12000, scoped, tag = 'internal scratch']
  %s0 = inlined_call_operand.vmem [shape: bf16[2,8,16,18], index: 0, kind: input, shape index: {}]
  %s1 = inlined_call_operand.vmem [shape: f32[8,1,1], index: 1, kind: input, shape index: {}]
  %s2 = inlined_call_operand.vmem [shape: f32[8,1,1], index: 2, kind: input, shape index: {}]
  %s3 = inlined_call_operand.hbm [shape: f32[2,8,16,16], index: 3, kind: output, shape index: {}]
  %s4 = sld [smem:[#allocation0]]
  $region45: #{cnn_block_forward.3} parent=0
    _
  %s6 = ssub.s32 1, %s4
  %s7 = scalar_select 0, %s6, %s4
  $region1: #{cnn_block_forward.3} parent=0
    #allocation2 [shape = 'u8[131072]{0}', space=vmem, size = 0x20000, scoped, tag = 'output window, operand 0']
    #allocation3 [shape = 's32[2]{0}', space=sflag, size = 0x8, scoped, tag = 'scoped memory for cnn_block_forward.3']
    %8 = vsyncpa [#allocation3], 0
    %s9 = scalar_lea.sflag [#allocation3], 1
    %10 = vsyncpa %s9, 0
    loop: start=0, step=1, limit=4
    $region2: #{cnn_block_forward.3} parent=1 // loop_pre_header
      _
    $region3: #{cnn_block_forward.3} parent=1 // loop_header
      %s12 = sphi 0, %s16
      %p13 = scmp.ge.s32.totalorder %s12, 4
      %s22 = sphi 0, %s24
      %s25 = sphi 0, %s22
      %s26 = sphi 0, %s25
      %s42 = sphi 0, %s26
      %s46 = sphi 0, %s46
      %s48 = sphi 0, %s46
      %s49 = sphi 0, %s48
      %s63 = sphi 0, %s49
      %s67 = sphi 0, %s67
      %s69 = sphi 0, %s67
      %s70 = sphi 0, %s69
      %s84 = sphi 0, %s70
      %s90 = sphi 0, %s92
      %s93 = sphi 0, %s90
      %s94 = sphi 0, %s93
      %s110 = sphi 0, %s94
    $region4: #{cnn_block_forward.3} parent=1 // loop_header_branch
      %15 = sbr.rel (%p13) target = $region8
    $region5: #{cnn_block_forward.3} parent=1 // loop_body
      %s17 = ssub.s32 %s12, 1
      %s18 = ssub.s32 %s12, 2
      %s19 = sadd.s32 %s12, 1
      %s20 = ssub.s32 %s12, %s19
      %p21 = scmp.eq.s32.totalorder %s20, 0
      %s23 = sadd.s32 %s22, 1
      %s24 = scalar_select %p21, %s22, %s23
      %p27 = pneg %p21
      %p28 = scmp.eq.s32.totalorder %s12, 1
      %p29 = por %p27, %p28
      %p30 = scmp.ne.s32.totalorder %s22, %s25
      %p31 = scmp.eq.s32.totalorder %s12, 0
      %p32 = por %p30, %p31
      %p33 = scmp.ne.s32.totalorder %s22, %s25
      %p34 = scmp.eq.s32.totalorder %s17, 1
      %p35 = por %p33, %p34
      %p36 = scmp.ne.s32.totalorder %s25, %s26
      %p37 = scmp.eq.s32.totalorder %s17, 0
      %p38 = por %p36, %p37
      %p39 = scmp.ne.s32.totalorder %s25, %s26
      %p40 = scmp.eq.s32.totalorder %s18, 1
      %p41 = por %p39, %p40
      %p43 = scmp.ne.s32.totalorder %s26, %s42
      %p44 = scmp.eq.s32.totalorder %s18, 0
      %p45 = por %p43, %p44
      %s47 = sadd.s32 %s46, 1
      %p50 = scmp.eq.s32.totalorder %s12, 1
      %p51 = scmp.ne.s32.totalorder %s46, %s48
      %p52 = scmp.eq.s32.totalorder %s12, 0
      %p53 = por %p51, %p52
      %p54 = scmp.ne.s32.totalorder %s46, %s48
      %p55 = scmp.eq.s32.totalorder %s17, 1
      %p56 = por %p54, %p55
      %p57 = scmp.ne.s32.totalorder %s48, %s49
      %p58 = scmp.eq.s32.totalorder %s17, 0
      %p59 = por %p57, %p58
      %p60 = scmp.ne.s32.totalorder %s48, %s49
      %p61 = scmp.eq.s32.totalorder %s18, 1
      %p62 = por %p60, %p61
      %p64 = scmp.ne.s32.totalorder %s49, %s63
      %p65 = scmp.eq.s32.totalorder %s18, 0
      %p66 = por %p64, %p65
      %s68 = sadd.s32 %s67, 1
      %p71 = scmp.eq.s32.totalorder %s12, 1
      %p72 = scmp.ne.s32.totalorder %s67, %s69
      %p73 = scmp.eq.s32.totalorder %s12, 0
      %p74 = por %p72, %p73
      %p75 = scmp.ne.s32.totalorder %s67, %s69
      %p76 = scmp.eq.s32.totalorder %s17, 1
      %p77 = por %p75, %p76
      %p78 = scmp.ne.s32.totalorder %s69, %s70
      %p79 = scmp.eq.s32.totalorder %s17, 0
      %p80 = por %p78, %p79
      %p81 = scmp.ne.s32.totalorder %s69, %s70
      %p82 = scmp.eq.s32.totalorder %s18, 1
      %p83 = por %p81, %p82
      %p85 = scmp.ne.s32.totalorder %s70, %s84
      %p86 = scmp.eq.s32.totalorder %s18, 0
      %p87 = por %p85, %p86
      %s88 = ssub.s32 %s12, %s19
      %p89 = scmp.eq.s32.totalorder %s88, 0
      %s91 = sadd.s32 %s90, 1
      %s92 = scalar_select %p89, %s90, %s91
      %p95 = pneg %p89
      %p96 = scmp.eq.s32.totalorder %s12, 1
      %p97 = por %p95, %p96
      %p98 = scmp.ne.s32.totalorder %s90, %s93
      %p99 = scmp.eq.s32.totalorder %s12, 0
      %p100 = por %p98, %p99
      %p101 = scmp.ne.s32.totalorder %s90, %s93
      %p102 = scmp.eq.s32.totalorder %s17, 1
      %p103 = por %p101, %p102
      %p104 = scmp.ne.s32.totalorder %s93, %s94
      %p105 = scmp.eq.s32.totalorder %s17, 0
      %p106 = por %p104, %p105
      %p107 = scmp.ne.s32.totalorder %s93, %s94
      %p108 = scmp.eq.s32.totalorder %s18, 1
      %p109 = por %p107, %p108
      %p111 = scmp.ne.s32.totalorder %s94, %s110
      %p112 = scmp.eq.s32.totalorder %s18, 0
      %p113 = por %p111, %p112
      %p114 = scmp.le.s32.totalorder 1, %s12
      %p115 = scmp.lt.s32.totalorder %s12, 3
      %p116 = pnand %p114, %p115
      %p117 = pneg %p116
      // Predicated region
      $region9: #{cnn_block_forward.3} parent=5 // pred_check
        _
      $region10: #{cnn_block_forward.3} parent=5 // pred_check_branch
        %119 = sbr.rel (%p116) target = $region12
      $region11: #{cnn_block_forward.3} parent=5 // pred_region
        %s120 = ssub.s32 %s12, 1
        // Predicated region
        $region13: #{cnn_block_forward.3} parent=11 // pred_check
          %p121 = pneg %p59
        $region14: #{cnn_block_forward.3} parent=11 // pred_check_branch
          %123 = sbr.rel (%p121) target = $region16
        $region15: #{cnn_block_forward.3} parent=11 // pred_region
          _
        $region16: #{cnn_block_forward.3} parent=11 // pred_fallthru
          _
        // Predicated region
        $region17: #{cnn_block_forward.3} parent=11 // pred_check
          %p124 = pneg %p80
        $region18: #{cnn_block_forward.3} parent=11 // pred_check_branch
          %126 = sbr.rel (%p124) target = $region20
        $region19: #{cnn_block_forward.3} parent=11 // pred_region
          _
        $region20: #{cnn_block_forward.3} parent=11 // pred_fallthru
          _
      $region12: #{cnn_block_forward.3} parent=5 // pred_fallthru
        _
      %p127 = scmp.lt.s32.totalorder %s12, 2
      // Predicated region
      $region21: #{cnn_block_forward.3} parent=5 // pred_check
        %p128 = pneg %p127
      $region22: #{cnn_block_forward.3} parent=5 // pred_check_branch
        %130 = sbr.rel (%p128) target = $region24
      $region23: #{cnn_block_forward.3} parent=5 // pred_region
        // Predicated region
        $region25: #{cnn_block_forward.3} parent=23 // pred_check
          %p131 = pneg %p32
        $region26: #{cnn_block_forward.3} parent=23 // pred_check_branch
          %133 = sbr.rel (%p131) target = $region28
        $region27: #{cnn_block_forward.3} parent=23 // pred_region
          %p134 = scmp.lt.s32.totalorder %s12, 1
          %s135 = scalar_select %p134, %s12, 1
          %s136 = smul.addr %s135, 16
          %s137 = smul.addr %s136, 4
          %s138 = scalar_lea.vmem %s0, %s137
        $region28: #{cnn_block_forward.3} parent=23 // pred_fallthru
          _
      $region24: #{cnn_block_forward.3} parent=5 // pred_fallthru
        _
      %p139 = scmp.le.s32.totalorder 1, %s12
      %p140 = scmp.lt.s32.totalorder %s12, 3
      %p141 = pnand %p139, %p140
      %p142 = pneg %p141
      // Predicated region
      $region29: #{cnn_block_forward.3} parent=5 // pred_check
        _
      $region30: #{cnn_block_forward.3} parent=5 // pred_check_branch
        %144 = sbr.rel (%p141) target = $region32
      $region31: #{cnn_block_forward.3} parent=5 // pred_region
        %s145 = ssub.s32 %s12, 1
        %p146 = scmp.lt.s32.totalorder %s17, 1
        %s147 = scalar_select %p146, %s17, 1
        %s148 = smul.addr %s147, 16
        %s149 = smul.addr %s148, 4
        %s150 = scalar_lea.vmem %s0, %s149
        %p151 = pneg %p38
        %p152 = pneg %p35
        %p153 = pneg %p59
        %p154 = pneg %p56
        %p155 = pneg %p80
        %p156 = pneg %p77
        %p157 = pneg %p106
        %p158 = pneg %p103
        %s159 = sand.u32 %s93, 1
        %s160 = scalar_lea.sflag [#allocation3], %s159
        %s161 = sand.u32 %s93, 1
        %s162 = smul.addr %s161, 128
        %s163 = scalar_lea.vmem [#allocation2], %s162
        %p164 = scmp.lt.s32.totalorder %s17, 1
        %s165 = scalar_select %p164, %s17, 1
        %s166 = smul.addr %s165, 16
        %s167 = smul.addr %s166, 4
        %s168 = scalar_lea.vmem %s0, %s167
        %v169 = vld [vmem:[%s168] sm:$0xf]
        %v170 = vld [vmem:[%s168 + $0x4] sm:$0xf]
        %v171 = vld [vmem:[%s168 + $0x8] sm:$0xf]
        %v172 = vld [vmem:[%s168 + $0xc] sm:$0xf]
        %v173 = vld [vmem:[%s168 + $0x10] sm:$0xf]
        %v174 = vld [vmem:[%s168 + $0x14] sm:$0xf]
        %v175 = vld [vmem:[%s168 + $0x18] sm:$0xf]
        %v176 = vld [vmem:[%s168 + $0x1c] sm:$0xf]
        %v177 = vld [vmem:[%s168 + $0x20] sm:$0xf]
        %v178 = vld [vmem:[%s168 + $0x24] sm:$0xf]
        %v179 = vld [vmem:[%s168 + $0x28] sm:$0xf]
        %v180 = vld [vmem:[%s168 + $0x2c] sm:$0xf]
        %v181 = vld [vmem:[%s168 + $0x30] sm:$0xf]
        %v182 = vld [vmem:[%s168 + $0x34] sm:$0xf]
        %v183 = vld [vmem:[%s168 + $0x38] sm:$0xf]
        %v184 = vld [vmem:[%s168 + $0x3c] sm:$0xf]
        %v185 = vunpack.c.l.bf16 %v169
        %v186 = vunpack.c.l.bf16 %v170
        %v187 = vunpack.c.l.bf16 %v171
        %v188 = vunpack.c.l.bf16 %v172
        %v189 = vunpack.c.l.bf16 %v173
        %v190 = vunpack.c.l.bf16 %v174
        %v191 = vunpack.c.l.bf16 %v175
        %v192 = vunpack.c.l.bf16 %v176
        %v193 = vunpack.c.l.bf16 %v177
        %v194 = vunpack.c.l.bf16 %v178
        %v195 = vunpack.c.l.bf16 %v179
        %v196 = vunpack.c.l.bf16 %v180
        %v197 = vunpack.c.l.bf16 %v181
        %v198 = vunpack.c.l.bf16 %v182
        %v199 = vunpack.c.l.bf16 %v183
        %v200 = vunpack.c.l.bf16 %v184
        %v201 = vld [vmem:[%s1] sm:$0x1]
        %v202 = vld [vmem:[%s1 + $0x1] sm:$0x1]
        %v203 = vld [vmem:[%s1 + $0x2] sm:$0x1]
        %v204 = vld [vmem:[%s1 + $0x3] sm:$0x1]
        %v205 = vld [vmem:[%s1 + $0x4] sm:$0x1]
        %v206 = vld [vmem:[%s1 + $0x5] sm:$0x1]
        %v207 = vld [vmem:[%s1 + $0x6] sm:$0x1]
        %v208 = vld [vmem:[%s1 + $0x7] sm:$0x1]
        %v217 = vlaneseq
        %v218 = vshrl.u32 %v217, 7
        %v219 = vsub.s32 0, %v218
        %v220 = vrot.slane %v201, %v219
        %v221 = vlaneseq
        %v222 = vshrl.u32 %v221, 7
        %v223 = vsub.s32 0, %v222
        %v224 = vrot.slane %v202, %v223
        %v225 = vlaneseq
        %v226 = vshrl.u32 %v225, 7
        %v227 = vsub.s32 0, %v226
        %v228 = vrot.slane %v203, %v227
        %v229 = vlaneseq
        %v230 = vshrl.u32 %v229, 7
        %v231 = vsub.s32 0, %v230
        %v232 = vrot.slane %v204, %v231
        %v233 = vlaneseq
        %v234 = vshrl.u32 %v233, 7
        %v235 = vsub.s32 0, %v234
        %v236 = vrot.slane %v205, %v235
        %v237 = vlaneseq
        %v238 = vshrl.u32 %v237, 7
        %v239 = vsub.s32 0, %v238
        %v240 = vrot.slane %v206, %v239
        %v241 = vlaneseq
        %v242 = vshrl.u32 %v241, 7
        %v243 = vsub.s32 0, %v242
        %v244 = vrot.slane %v207, %v243
        %v245 = vlaneseq
        %v246 = vshrl.u32 %v245, 7
        %v247 = vsub.s32 0, %v246
        %v248 = vrot.slane %v208, %v247
        %249 = vset.pattern.permute.xlu0 0
        %250 = vperm.xlu0 %249, %v220
        %v251 = vpop.permute.xlu0 %250
        %253 = vset.pattern.permute.xlu0 0
        %254 = vperm.xlu0 %253, %v224
        %v255 = vpop.permute.xlu0 %254
        %257 = vset.pattern.permute.xlu0 0
        %258 = vperm.xlu0 %257, %v228
        %v259 = vpop.permute.xlu0 %258
        %261 = vset.pattern.permute.xlu0 0
        %262 = vperm.xlu0 %261, %v232
        %v263 = vpop.permute.xlu0 %262
        %265 = vset.pattern.permute.xlu0 0
        %266 = vperm.xlu0 %265, %v236
        %v267 = vpop.permute.xlu0 %266
        %269 = vset.pattern.permute.xlu0 0
        %270 = vperm.xlu0 %269, %v240
        %v271 = vpop.permute.xlu0 %270
        %273 = vset.pattern.permute.xlu0 0
        %274 = vperm.xlu0 %273, %v244
        %v275 = vpop.permute.xlu0 %274
        %277 = vset.pattern.permute.xlu0 0
        %278 = vperm.xlu0 %277, %v248
        %v279 = vpop.permute.xlu0 %278
        %v281 = vmul.f32 %v185, %v251
        %v282 = vmul.f32 %v186, %v251
        %v283 = vmul.f32 %v187, %v255
        %v284 = vmul.f32 %v188, %v255
        %v285 = vmul.f32 %v189, %v259
        %v286 = vmul.f32 %v190, %v259
        %v287 = vmul.f32 %v191, %v263
        %v288 = vmul.f32 %v192, %v263
        %v289 = vmul.f32 %v193, %v267
        %v290 = vmul.f32 %v194, %v267
        %v291 = vmul.f32 %v195, %v271
        %v292 = vmul.f32 %v196, %v271
        %v293 = vmul.f32 %v197, %v275
        %v294 = vmul.f32 %v198, %v275
        %v295 = vmul.f32 %v199, %v279
        %v296 = vmul.f32 %v200, %v279
        %v297 = vld [vmem:[%s2] sm:$0x1]
        %v298 = vld [vmem:[%s2 + $0x1] sm:$0x1]
        %v299 = vld [vmem:[%s2 + $0x2] sm:$0x1]
        %v300 = vld [vmem:[%s2 + $0x3] sm:$0x1]
        %v301 = vld [vmem:[%s2 + $0x4] sm:$0x1]
        %v302 = vld [vmem:[%s2 + $0x5] sm:$0x1]
        %v303 = vld [vmem:[%s2 + $0x6] sm:$0x1]
        %v304 = vld [vmem:[%s2 + $0x7] sm:$0x1]
        %v313 = vlaneseq
        %v314 = vshrl.u32 %v313, 7
        %v315 = vsub.s32 0, %v314
        %v316 = vrot.slane %v297, %v315
        %v317 = vlaneseq
        %v318 = vshrl.u32 %v317, 7
        %v319 = vsub.s32 0, %v318
        %v320 = vrot.slane %v298, %v319
        %v321 = vlaneseq
        %v322 = vshrl.u32 %v321, 7
        %v323 = vsub.s32 0, %v322
        %v324 = vrot.slane %v299, %v323
        %v325 = vlaneseq
        %v326 = vshrl.u32 %v325, 7
        %v327 = vsub.s32 0, %v326
        %v328 = vrot.slane %v300, %v327
        %v329 = vlaneseq
        %v330 = vshrl.u32 %v329, 7
        %v331 = vsub.s32 0, %v330
        %v332 = vrot.slane %v301, %v331
        %v333 = vlaneseq
        %v334 = vshrl.u32 %v333, 7
        %v335 = vsub.s32 0, %v334
        %v336 = vrot.slane %v302, %v335
        %v337 = vlaneseq
        %v338 = vshrl.u32 %v337, 7
        %v339 = vsub.s32 0, %v338
        %v340 = vrot.slane %v303, %v339
        %v341 = vlaneseq
        %v342 = vshrl.u32 %v341, 7
        %v343 = vsub.s32 0, %v342
        %v344 = vrot.slane %v304, %v343
        %345 = vset.pattern.permute.xlu0 0
        %346 = vperm.xlu0 %345, %v316
        %v347 = vpop.permute.xlu0 %346
        %349 = vset.pattern.permute.xlu0 0
        %350 = vperm.xlu0 %349, %v320
        %v351 = vpop.permute.xlu0 %350
        %353 = vset.pattern.permute.xlu0 0
        %354 = vperm.xlu0 %353, %v324
        %v355 = vpop.permute.xlu0 %354
        %357 = vset.pattern.permute.xlu0 0
        %358 = vperm.xlu0 %357, %v328
        %v359 = vpop.permute.xlu0 %358
        %361 = vset.pattern.permute.xlu0 0
        %362 = vperm.xlu0 %361, %v332
        %v363 = vpop.permute.xlu0 %362
        %365 = vset.pattern.permute.xlu0 0
        %366 = vperm.xlu0 %365, %v336
        %v367 = vpop.permute.xlu0 %366
        %369 = vset.pattern.permute.xlu0 0
        %370 = vperm.xlu0 %369, %v340
        %v371 = vpop.permute.xlu0 %370
        %373 = vset.pattern.permute.xlu0 0
        %374 = vperm.xlu0 %373, %v344
        %v375 = vpop.permute.xlu0 %374
        %v377 = vadd.f32 %v281, %v347
        %v378 = vadd.f32 %v282, %v347
        %v379 = vadd.f32 %v283, %v351
        %v380 = vadd.f32 %v284, %v351
        %v381 = vadd.f32 %v285, %v355
        %v382 = vadd.f32 %v286, %v355
        %v383 = vadd.f32 %v287, %v359
        %v384 = vadd.f32 %v288, %v359
        %v385 = vadd.f32 %v289, %v363
        %v386 = vadd.f32 %v290, %v363
        %v387 = vadd.f32 %v291, %v367
        %v388 = vadd.f32 %v292, %v367
        %v389 = vadd.f32 %v293, %v371
        %v390 = vadd.f32 %v294, %v371
        %v391 = vadd.f32 %v295, %v375
        %v392 = vadd.f32 %v296, %v375
        %vm393 = vcmp.ge.f32.partialorder %v377, 0.0
        %vm394 = vcmp.ge.f32.partialorder %v378, 0.0
        %vm395 = vcmp.ge.f32.partialorder %v379, 0.0
        %vm396 = vcmp.ge.f32.partialorder %v380, 0.0
        %vm397 = vcmp.ge.f32.partialorder %v381, 0.0
        %vm398 = vcmp.ge.f32.partialorder %v382, 0.0
        %vm399 = vcmp.ge.f32.partialorder %v383, 0.0
        %vm400 = vcmp.ge.f32.partialorder %v384, 0.0
        %vm401 = vcmp.ge.f32.partialorder %v385, 0.0
        %vm402 = vcmp.ge.f32.partialorder %v386, 0.0
        %vm403 = vcmp.ge.f32.partialorder %v387, 0.0
        %vm404 = vcmp.ge.f32.partialorder %v388, 0.0
        %vm405 = vcmp.ge.f32.partialorder %v389, 0.0
        %vm406 = vcmp.ge.f32.partialorder %v390, 0.0
        %vm407 = vcmp.ge.f32.partialorder %v391, 0.0
        %vm408 = vcmp.ge.f32.partialorder %v392, 0.0
        %v409 = vmul.f32 %v377, 0.1
        %v410 = vmul.f32 %v378, 0.1
        %v411 = vmul.f32 %v379, 0.1
        %v412 = vmul.f32 %v380, 0.1
        %v413 = vmul.f32 %v381, 0.1
        %v414 = vmul.f32 %v382, 0.1
        %v415 = vmul.f32 %v383, 0.1
        %v416 = vmul.f32 %v384, 0.1
        %v417 = vmul.f32 %v385, 0.1
        %v418 = vmul.f32 %v386, 0.1
        %v419 = vmul.f32 %v387, 0.1
        %v420 = vmul.f32 %v388, 0.1
        %v421 = vmul.f32 %v389, 0.1
        %v422 = vmul.f32 %v390, 0.1
        %v423 = vmul.f32 %v391, 0.1
        %v424 = vmul.f32 %v392, 0.1
        %v425 = vsel %vm393, %v377, %v409
        %v426 = vsel %vm394, %v378, %v410
        %v427 = vsel %vm395, %v379, %v411
        %v428 = vsel %vm396, %v380, %v412
        %v429 = vsel %vm397, %v381, %v413
        %v430 = vsel %vm398, %v382, %v414
        %v431 = vsel %vm399, %v383, %v415
        %v432 = vsel %vm400, %v384, %v416
        %v433 = vsel %vm401, %v385, %v417
        %v434 = vsel %vm402, %v386, %v418
        %v435 = vsel %vm403, %v387, %v419
        %v436 = vsel %vm404, %v388, %v420
        %v437 = vsel %vm405, %v389, %v421
        %v438 = vsel %vm406, %v390, %v422
        %v439 = vsel %vm407, %v391, %v423
        %v440 = vsel %vm408, %v392, %v424
        %vm441 = vcmask 130048
        %442 = vst.msk [vmem:[%s163] sm:$0xff] %vm441, %v425
        %443 = vst.msk [vmem:[%s163 + $0x8] sm:$0xff] %vm441, %v426
        %444 = vst.msk [vmem:[%s163 + $0x10] sm:$0xff] %vm441, %v427
        %445 = vst.msk [vmem:[%s163 + $0x18] sm:$0xff] %vm441, %v428
        %446 = vst.msk [vmem:[%s163 + $0x20] sm:$0xff] %vm441, %v429
        %447 = vst.msk [vmem:[%s163 + $0x28] sm:$0xff] %vm441, %v430
        %448 = vst.msk [vmem:[%s163 + $0x30] sm:$0xff] %vm441, %v431
        %449 = vst.msk [vmem:[%s163 + $0x38] sm:$0xff] %vm441, %v432
        %450 = vst.msk [vmem:[%s163 + $0x40] sm:$0xff] %vm441, %v433
        %451 = vst.msk [vmem:[%s163 + $0x48] sm:$0xff] %vm441, %v434
        %452 = vst.msk [vmem:[%s163 + $0x50] sm:$0xff] %vm441, %v435
        %453 = vst.msk [vmem:[%s163 + $0x58] sm:$0xff] %vm441, %v436
        %454 = vst.msk [vmem:[%s163 + $0x60] sm:$0xff] %vm441, %v437
        %455 = vst.msk [vmem:[%s163 + $0x68] sm:$0xff] %vm441, %v438
        %456 = vst.msk [vmem:[%s163 + $0x70] sm:$0xff] %vm441, %v439
        %457 = vst.msk [vmem:[%s163 + $0x78] sm:$0xff] %vm441, %v440
        %s458 = sand.u32 %s93, 1
        %s459 = scalar_lea.sflag [#allocation3], %s458
        %s460 = sand.u32 %s93, 1
        %s461 = smul.addr %s460, 128
        %s462 = scalar_lea.vmem [#allocation2], %s461
        // Predicated region
        $region33: #{cnn_block_forward.3} parent=31 // pred_check
          %p463 = pneg %p103
        $region34: #{cnn_block_forward.3} parent=31 // pred_check_branch
          %465 = sbr.rel (%p463) target = $region36
        $region35: #{cnn_block_forward.3} parent=31 // pred_region
          %s467 = ssub.s32 2048, 2048
          %468 = vsyncadd %s459, %s467
          %s469 = smul.addr %s17, 16
          %s470 = smul.addr %s469, 128
          %s471 = scalar_lea.hbm %s3, %s470
          %s472 = sshll.u32 %s462, 4
          %s473 = int_to_ptr.vmem [resolvable:$true] %s472
          %478 = dma.vmem_to_hbm [thread:$0]  %s473, 2048, %s471, %s459, 128, 128, 8
        $region36: #{cnn_block_forward.3} parent=31 // pred_fallthru
          _
      $region32: #{cnn_block_forward.3} parent=5 // pred_fallthru
        _
      %p479 = scmp.le.s32.totalorder 2, %s12
      // Predicated region
      $region37: #{cnn_block_forward.3} parent=5 // pred_check
        %p480 = pneg %p479
      $region38: #{cnn_block_forward.3} parent=5 // pred_check_branch
        %482 = sbr.rel (%p480) target = $region40
      $region39: #{cnn_block_forward.3} parent=5 // pred_region
        %s483 = ssub.s32 %s12, 2
        // Predicated region
        $region41: #{cnn_block_forward.3} parent=39 // pred_check
          %p484 = pneg %p109
        $region42: #{cnn_block_forward.3} parent=39 // pred_check_branch
          %486 = sbr.rel (%p484) target = $region44
        $region43: #{cnn_block_forward.3} parent=39 // pred_region
          %s487 = sand.u32 %s94, 1
          %s488 = scalar_lea.sflag [#allocation3], %s487
          %s489 = sand.u32 %s94, 1
          %s490 = smul.addr %s489, 128
          %s491 = scalar_lea.vmem [#allocation2], %s490
          %492 = dma.done %s488, 2048
        $region44: #{cnn_block_forward.3} parent=39 // pred_fallthru
          _
      $region40: #{cnn_block_forward.3} parent=5 // pred_fallthru
        _
    $region6: #{cnn_block_forward.3} parent=1 // loop_footer
      %s16 = sadd.s32 1, %s12
    $region7: #{cnn_block_forward.3} parent=1 // loop_footer_branch
      %11 = sbr.rel target = $region3
    $region8: #{cnn_block_forward.3} parent=1 // loop_exit
      _
    %493 = vsyncpa [#allocation3], 1
    %s494 = scalar_lea.sflag [#allocation3], 1
    %495 = vsyncpa %s494, 1

// kernel: cnn_block_forward.2
$region0: #{cnn_block_forward.2}
  #allocation0 [shape = 'u32[]', space=smem, size = 0x4, offset = 0x4, fixed_abs, tag = 'smem constant byte address 0x4 - core index']
  #allocation1 [shape = 'u32[144,128]{1,0:T(1,128)}', space=vmem, size = 0x12000, scoped, tag = 'internal scratch']
  %s0 = inlined_call_operand.vmem [shape: bf16[2,4,384], index: 0, kind: input, shape index: {}]
  %s1 = inlined_call_operand.vmem [shape: bf16[9,8,4], index: 1, kind: input, shape index: {}]
  %s2 = inlined_call_operand.vmem [shape: f32[1,288], index: 2, kind: input, shape index: {}]
  %s3 = inlined_call_operand.vmem [shape: bf16[2,8,288], index: 3, kind: output, shape index: {0}]
  %s4 = inlined_call_operand.vmem [shape: f32[2,8,1], index: 4, kind: output, shape index: {1}]
  %s5 = inlined_call_operand.vmem [shape: f32[2,8,1], index: 5, kind: output, shape index: {2}]
  %6 = xla_tuple %s3, %s4, %s5
  %s7 = sld [smem:[#allocation0]]
  $region61: #{cnn_block_forward.2} parent=0
    _
  %s9 = ssub.s32 1, %s7
  %s10 = scalar_select 0, %s9, %s7
  loop: start=0, step=1, limit=4
  $region2: #{cnn_block_forward.2} parent=0 // loop_pre_header
    _
  $region3: #{cnn_block_forward.2} parent=0 // loop_header
    %s12 = sphi 0, %s16
    %p13 = scmp.ge.s32.totalorder %s12, 4
    %s22 = sphi 0, %s24
    %s25 = sphi 0, %s22
    %s26 = sphi 0, %s25
    %s42 = sphi 0, %s26
    %s46 = sphi 0, %s46
    %s48 = sphi 0, %s46
    %s49 = sphi 0, %s48
    %s63 = sphi 0, %s49
    %s67 = sphi 0, %s67
    %s69 = sphi 0, %s67
    %s70 = sphi 0, %s69
    %s84 = sphi 0, %s70
    %s90 = sphi 0, %s92
    %s93 = sphi 0, %s90
    %s94 = sphi 0, %s93
    %s110 = sphi 0, %s94
    %s116 = sphi 0, %s118
    %s119 = sphi 0, %s116
    %s120 = sphi 0, %s119
    %s136 = sphi 0, %s120
    %s142 = sphi 0, %s144
    %s145 = sphi 0, %s142
    %s146 = sphi 0, %s145
    %s162 = sphi 0, %s146
  $region4: #{cnn_block_forward.2} parent=0 // loop_header_branch
    %15 = sbr.rel (%p13) target = $region8
  $region5: #{cnn_block_forward.2} parent=0 // loop_body
    %s17 = ssub.s32 %s12, 1
    %s18 = ssub.s32 %s12, 2
    %s19 = sadd.s32 %s12, 1
    %s20 = ssub.s32 %s12, %s19
    %p21 = scmp.eq.s32.totalorder %s20, 0
    %s23 = sadd.s32 %s22, 1
    %s24 = scalar_select %p21, %s22, %s23
    %p27 = pneg %p21
    %p28 = scmp.eq.s32.totalorder %s12, 1
    %p29 = por %p27, %p28
    %p30 = scmp.ne.s32.totalorder %s22, %s25
    %p31 = scmp.eq.s32.totalorder %s12, 0
    %p32 = por %p30, %p31
    %p33 = scmp.ne.s32.totalorder %s22, %s25
    %p34 = scmp.eq.s32.totalorder %s17, 1
    %p35 = por %p33, %p34
    %p36 = scmp.ne.s32.totalorder %s25, %s26
    %p37 = scmp.eq.s32.totalorder %s17, 0
    %p38 = por %p36, %p37
    %p39 = scmp.ne.s32.totalorder %s25, %s26
    %p40 = scmp.eq.s32.totalorder %s18, 1
    %p41 = por %p39, %p40
    %p43 = scmp.ne.s32.totalorder %s26, %s42
    %p44 = scmp.eq.s32.totalorder %s18, 0
    %p45 = por %p43, %p44
    %s47 = sadd.s32 %s46, 1
    %p50 = scmp.eq.s32.totalorder %s12, 1
    %p51 = scmp.ne.s32.totalorder %s46, %s48
    %p52 = scmp.eq.s32.totalorder %s12, 0
    %p53 = por %p51, %p52
    %p54 = scmp.ne.s32.totalorder %s46, %s48
    %p55 = scmp.eq.s32.totalorder %s17, 1
    %p56 = por %p54, %p55
    %p57 = scmp.ne.s32.totalorder %s48, %s49
    %p58 = scmp.eq.s32.totalorder %s17, 0
    %p59 = por %p57, %p58
    %p60 = scmp.ne.s32.totalorder %s48, %s49
    %p61 = scmp.eq.s32.totalorder %s18, 1
    %p62 = por %p60, %p61
    %p64 = scmp.ne.s32.totalorder %s49, %s63
    %p65 = scmp.eq.s32.totalorder %s18, 0
    %p66 = por %p64, %p65
    %s68 = sadd.s32 %s67, 1
    %p71 = scmp.eq.s32.totalorder %s12, 1
    %p72 = scmp.ne.s32.totalorder %s67, %s69
    %p73 = scmp.eq.s32.totalorder %s12, 0
    %p74 = por %p72, %p73
    %p75 = scmp.ne.s32.totalorder %s67, %s69
    %p76 = scmp.eq.s32.totalorder %s17, 1
    %p77 = por %p75, %p76
    %p78 = scmp.ne.s32.totalorder %s69, %s70
    %p79 = scmp.eq.s32.totalorder %s17, 0
    %p80 = por %p78, %p79
    %p81 = scmp.ne.s32.totalorder %s69, %s70
    %p82 = scmp.eq.s32.totalorder %s18, 1
    %p83 = por %p81, %p82
    %p85 = scmp.ne.s32.totalorder %s70, %s84
    %p86 = scmp.eq.s32.totalorder %s18, 0
    %p87 = por %p85, %p86
    %s88 = ssub.s32 %s12, %s19
    %p89 = scmp.eq.s32.totalorder %s88, 0
    %s91 = sadd.s32 %s90, 1
    %s92 = scalar_select %p89, %s90, %s91
    %p95 = pneg %p89
    %p96 = scmp.eq.s32.totalorder %s12, 1
    %p97 = por %p95, %p96
    %p98 = scmp.ne.s32.totalorder %s90, %s93
    %p99 = scmp.eq.s32.totalorder %s12, 0
    %p100 = por %p98, %p99
    %p101 = scmp.ne.s32.totalorder %s90, %s93
    %p102 = scmp.eq.s32.totalorder %s17, 1
    %p103 = por %p101, %p102
    %p104 = scmp.ne.s32.totalorder %s93, %s94
    %p105 = scmp.eq.s32.totalorder %s17, 0
    %p106 = por %p104, %p105
    %p107 = scmp.ne.s32.totalorder %s93, %s94
    %p108 = scmp.eq.s32.totalorder %s18, 1
    %p109 = por %p107, %p108
    %p111 = scmp.ne.s32.totalorder %s94, %s110
    %p112 = scmp.eq.s32.totalorder %s18, 0
    %p113 = por %p111, %p112
    %s114 = ssub.s32 %s12, %s19
    %p115 = scmp.eq.s32.totalorder %s114, 0
    %s117 = sadd.s32 %s116, 1
    %s118 = scalar_select %p115, %s116, %s117
    %p121 = pneg %p115
    %p122 = scmp.eq.s32.totalorder %s12, 1
    %p123 = por %p121, %p122
    %p124 = scmp.ne.s32.totalorder %s116, %s119
    %p125 = scmp.eq.s32.totalorder %s12, 0
    %p126 = por %p124, %p125
    %p127 = scmp.ne.s32.totalorder %s116, %s119
    %p128 = scmp.eq.s32.totalorder %s17, 1
    %p129 = por %p127, %p128
    %p130 = scmp.ne.s32.totalorder %s119, %s120
    %p131 = scmp.eq.s32.totalorder %s17, 0
    %p132 = por %p130, %p131
    %p133 = scmp.ne.s32.totalorder %s119, %s120
    %p134 = scmp.eq.s32.totalorder %s18, 1
    %p135 = por %p133, %p134
    %p137 = scmp.ne.s32.totalorder %s120, %s136
    %p138 = scmp.eq.s32.totalorder %s18, 0
    %p139 = por %p137, %p138
    %s140 = ssub.s32 %s12, %s19
    %p141 = scmp.eq.s32.totalorder %s140, 0
    %s143 = sadd.s32 %s142, 1
    %s144 = scalar_select %p141, %s142, %s143
    %p147 = pneg %p141
    %p148 = scmp.eq.s32.totalorder %s12, 1
    %p149 = por %p147, %p148
    %p150 = scmp.ne.s32.totalorder %s142, %s145
    %p151 = scmp.eq.s32.totalorder %s12, 0
    %p152 = por %p150, %p151
    %p153 = scmp.ne.s32.totalorder %s142, %s145
    %p154 = scmp.eq.s32.totalorder %s17, 1
    %p155 = por %p153, %p154
    %p156 = scmp.ne.s32.totalorder %s145, %s146
    %p157 = scmp.eq.s32.totalorder %s17, 0
    %p158 = por %p156, %p157
    %p159 = scmp.ne.s32.totalorder %s145, %s146
    %p160 = scmp.eq.s32.totalorder %s18, 1
    %p161 = por %p159, %p160
    %p163 = scmp.ne.s32.totalorder %s146, %s162
    %p164 = scmp.eq.s32.totalorder %s18, 0
    %p165 = por %p163, %p164
    %p166 = scmp.le.s32.totalorder 1, %s12
    %p167 = scmp.lt.s32.totalorder %s12, 3
    %p168 = pnand %p166, %p167
    %p169 = pneg %p168
    // Predicated region
    $region9: #{cnn_block_forward.2} parent=5 // pred_check
      _
    $region10: #{cnn_block_forward.2} parent=5 // pred_check_branch
      %171 = sbr.rel (%p168) target = $region12
    $region11: #{cnn_block_forward.2} parent=5 // pred_region
      %s172 = ssub.s32 %s12, 1
      // Predicated region
      $region13: #{cnn_block_forward.2} parent=11 // pred_check
        %p173 = pneg %p59
      $region14: #{cnn_block_forward.2} parent=11 // pred_check_branch
        %175 = sbr.rel (%p173) target = $region16
      $region15: #{cnn_block_forward.2} parent=11 // pred_region
        _
      $region16: #{cnn_block_forward.2} parent=11 // pred_fallthru
        _
      // Predicated region
      $region17: #{cnn_block_forward.2} parent=11 // pred_check
        %p176 = pneg %p80
      $region18: #{cnn_block_forward.2} parent=11 // pred_check_branch
        %178 = sbr.rel (%p176) target = $region20
      $region19: #{cnn_block_forward.2} parent=11 // pred_region
        _
      $region20: #{cnn_block_forward.2} parent=11 // pred_fallthru
        _
    $region12: #{cnn_block_forward.2} parent=5 // pred_fallthru
      _
    %p179 = scmp.lt.s32.totalorder %s12, 2
    // Predicated region
    $region21: #{cnn_block_forward.2} parent=5 // pred_check
      %p180 = pneg %p179
    $region22: #{cnn_block_forward.2} parent=5 // pred_check_branch
      %182 = sbr.rel (%p180) target = $region24
    $region23: #{cnn_block_forward.2} parent=5 // pred_region
      // Predicated region
      $region25: #{cnn_block_forward.2} parent=23 // pred_check
        %p183 = pneg %p32
      $region26: #{cnn_block_forward.2} parent=23 // pred_check_branch
        %185 = sbr.rel (%p183) target = $region28
      $region27: #{cnn_block_forward.2} parent=23 // pred_region
        %p186 = scmp.lt.s32.totalorder %s12, 1
        %s187 = scalar_select %p186, %s12, 1
        %s188 = smul.addr %s187, 3
        %s189 = smul.addr %s188, 2
        %s190 = scalar_lea.vmem %s0, %s189
      $region28: #{cnn_block_forward.2} parent=23 // pred_fallthru
        _
    $region24: #{cnn_block_forward.2} parent=5 // pred_fallthru
      _
    %p191 = scmp.le.s32.totalorder 1, %s12
    %p192 = scmp.lt.s32.totalorder %s12, 3
    %p193 = pnand %p191, %p192
    %p194 = pneg %p193
    // Predicated region
    $region29: #{cnn_block_forward.2} parent=5 // pred_check
      _
    $region30: #{cnn_block_forward.2} parent=5 // pred_check_branch
      %196 = sbr.rel (%p193) target = $region32
    $region31: #{cnn_block_forward.2} parent=5 // pred_region
      %s197 = ssub.s32 %s12, 1
      %p198 = scmp.lt.s32.totalorder %s17, 1
      %s199 = scalar_select %p198, %s17, 1
      %s200 = smul.addr %s199, 3
      %s201 = smul.addr %s200, 2
      %s202 = scalar_lea.vmem %s0, %s201
      %p203 = pneg %p38
      %p204 = pneg %p35
      %p205 = pneg %p59
      %p206 = pneg %p56
      %p207 = pneg %p80
      %p208 = pneg %p77
      %p209 = pneg %p106
      %p210 = pneg %p103
      %p211 = scmp.lt.s32.totalorder %s17, 1
      %s212 = scalar_select %p211, %s17, 1
      %s213 = smul.addr %s212, 3
      %s214 = smul.addr %s213, 4
      %s215 = scalar_lea.vmem %s3, %s214
      %p216 = pneg %p132
      %p217 = pneg %p129
      %p218 = scmp.lt.s32.totalorder %s17, 1
      %s219 = scalar_select %p218, %s17, 1
      %s220 = smul.addr %s219, 8
      %s221 = scalar_lea.vmem %s4, %s220
      %p222 = pneg %p158
      %p223 = pneg %p155
      %p224 = scmp.lt.s32.totalorder %s17, 1
      %s225 = scalar_select %p224, %s17, 1
      %s226 = smul.addr %s225, 8
      %s227 = scalar_lea.vmem %s5, %s226
      %p228 = scmp.lt.s32.totalorder %s17, 1
      %s229 = scalar_select %p228, %s17, 1
      %s230 = smul.addr %s229, 3
      %s231 = smul.addr %s230, 2
      %s232 = scalar_lea.vmem %s0, %s231
      %p233 = scmp.lt.s32.totalorder %s17, 1
      %s234 = scalar_select %p233, %s17, 1
      %s235 = smul.addr %s234, 3
      %s236 = smul.addr %s235, 4
      %s237 = scalar_lea.vmem %s3, %s236
      %p238 = scmp.lt.s32.totalorder %s17, 1
      %s239 = scalar_select %p238, %s17, 1
      %s240 = smul.addr %s239, 8
      %s241 = scalar_lea.vmem %s4, %s240
      %p242 = scmp.lt.s32.totalorder %s17, 1
      %s243 = scalar_select %p242, %s17, 1
      %s244 = smul.addr %s243, 8
      %s245 = scalar_lea.vmem %s5, %s244
      %v247 = vld [vmem:[%s232] sm:$0x3f]
      %v248 = vld [vmem:[%s1] sm:$0xf]
      %s249 = scalar_lea.vmem %s1, 4
      %v250 = vld [vmem:[%s249] sm:$0xf]
      %v252 = vcombine.high %v247, %v247
      %v254 = vunpack.c.l.s4 1983009808
      %v255 = vunpack.c.0.s8 %v254
      %v256 = vlaneseq
      %v257 = vshrl.u32 %v256, 7
      %v258 = vsub.s32 %v255, %v257
      %v259 = vrot.slane %v247, %v258
      %v261 = vunpack.c.l.s4 1983009808
      %v262 = vunpack.c.0.s8 %v261
      %v263 = vlaneseq
      %v264 = vshrl.u32 %v263, 7
      %v265 = vsub.s32 %v262, %v264
      %v266 = vrot.slane %v252, %v265
      %v267 = vcombine.high %v259, %v259
      %268 = vrot.lane.b32.xlu0 %v259, 127
      %v269 = vpop.permute.xlu0 %268
      %270 = vrot.lane.b32.xlu0 %v267, 127
      %v271 = vpop.permute.xlu0 %270
      %272 = vrot.lane.b32.xlu0 %v266, 127
      %v273 = vpop.permute.xlu0 %272
      %vm274 = vcmask 1039360
      %v275 = vsel %vm274, %v269, %v271
      %v276 = vsel %vm274, %v271, %v273
      %vm277 = vcmask 31744
      %v279 = vsel %vm277, %v250, 0
      %vm281 = vcmask 1041408
      %v283 = vsel %vm281, %v275, 0
      %v286 = vsel %vm281, %v276, 0
      %v289 = vsel %vm281, %v273, 0
      %291 = vmatprep.subr.bf16.mxu0 %v286
      %292 = vmatpush1.bf16.msra.mxu0 %v283
      %293 = vmatprep.subr.bf16.mxu0 0
      %294 = vmatpush1.bf16.msra.mxu0 0
      %295 = vmatprep.subr.bf16.mxu0 0
      %296 = vmatpush1.bf16.msra.mxu0 0
      %297 = vmatprep.subr.bf16.mxu0 0
      %298 = vmatpush1.bf16.msra.mxu0 0
      %299 = vmatprep.subr.bf16.mxu0 0
      %300 = vmatpush1.bf16.msra.mxu0 0
      %301 = vmatprep.subr.bf16.mxu0 0
      %302 = vmatpush1.bf16.msra.mxu0 0
      %303 = vmatprep.subr.bf16.mxu0 0
      %304 = vmatpush1.bf16.msra.mxu0 0
      %305 = vmatprep.subr.bf16.mxu0 0
      %306 = vmatpush1.bf16.msra.mxu0 0
      %307 = vmatprep.subr.bf16.mxu0 0
      %308 = vmatpush1.bf16.msra.mxu0 0
      %309 = vmatprep.subr.bf16.mxu0 0
      %310 = vmatpush1.bf16.msra.mxu0 0
      %311 = vmatprep.subr.bf16.mxu0 0
      %312 = vmatpush1.bf16.msra.mxu0 0
      %313 = vmatprep.subr.bf16.mxu0 0
      %314 = vmatpush1.bf16.msra.mxu0 0
      %315 = vmatprep.subr.bf16.mxu0 0
      %316 = vmatpush1.bf16.msra.mxu0 0
      %317 = vmatprep.subr.bf16.mxu0 0
      %318 = vmatpush1.bf16.msra.mxu0 0
      %319 = vmatprep.subr.bf16.mxu0 0
      %320 = vmatpush1.bf16.msra.mxu0 0
      %321 = vmatprep.subr.bf16.mxu0 0
      %322 = vmatpush1.bf16.msra.mxu0 0
      %323 = vmatprep.mubr.bf16.mxu0 0
      %324 = vmatmul.mubr.bf16.gmra.mrb[0].mxu0 %v279
      %v325 = vpop.f32.mrb[0].mxu0
      %v326 = vadd.f32 0.0, %v325
      %v327 = vpop.f32.mrb[0].mxu0
      %v328 = vadd.f32 0.0, %v327
      %v329 = vpop.f32.mrb[0].mxu0
      %v330 = vpop.f32.mrb[0].mxu0
      %331 = vdwg.mxu0
      %332 = vmatprep.subr.bf16.mxu0 0
      %333 = vmatpush1.bf16.msra.mxu0 %v289
      %334 = vmatprep.subr.bf16.mxu0 0
      %335 = vmatpush1.bf16.msra.mxu0 0
      %336 = vmatprep.subr.bf16.mxu0 0
      %337 = vmatpush1.bf16.msra.mxu0 0
      %338 = vmatprep.subr.bf16.mxu0 0
      %339 = vmatpush1.bf16.msra.mxu0 0
      %340 = vmatprep.subr.bf16.mxu0 0
      %341 = vmatpush1.bf16.msra.mxu0 0
      %342 = vmatprep.subr.bf16.mxu0 0
      %343 = vmatpush1.bf16.msra.mxu0 0
      %344 = vmatprep.subr.bf16.mxu0 0
      %345 = vmatpush1.bf16.msra.mxu0 0
      %346 = vmatprep.subr.bf16.mxu0 0
      %347 = vmatpush1.bf16.msra.mxu0 0
      %348 = vmatprep.subr.bf16.mxu0 0
      %349 = vmatpush1.bf16.msra.mxu0 0
      %350 = vmatprep.subr.bf16.mxu0 0
      %351 = vmatpush1.bf16.msra.mxu0 0
      %352 = vmatprep.subr.bf16.mxu0 0
      %353 = vmatpush1.bf16.msra.mxu0 0
      %354 = vmatprep.subr.bf16.mxu0 0
      %355 = vmatpush1.bf16.msra.mxu0 0
      %356 = vmatprep.subr.bf16.mxu0 0
      %357 = vmatpush1.bf16.msra.mxu0 0
      %358 = vmatprep.subr.bf16.mxu0 0
      %359 = vmatpush1.bf16.msra.mxu0 0
      %360 = vmatprep.subr.bf16.mxu0 0
      %361 = vmatpush1.bf16.msra.mxu0 0
      %362 = vmatprep.subr.bf16.mxu0 0
      %363 = vmatpush1.bf16.msra.mxu0 0
      %364 = vmatprep.mubr.bf16.mxu0 0
      %365 = vmatmul.mubr.bf16.gmra.mrb[0].mxu0 %v279
      %v366 = vpop.f32.mrb[0].mxu0
      %v367 = vadd.f32 0.0, %v366
      %v368 = vpop.f32.mrb[0].mxu0
      %v369 = vpop.f32.mrb[0].mxu0
      %v370 = vpop.f32.mrb[0].mxu0
      %371 = vdwg.mxu0
      %v373 = vsel %vm277, %v248, 0
      %v376 = vsel %vm281, %v259, 0
      %v379 = vsel %vm281, %v267, 0
      %v382 = vsel %vm281, %v266, 0
      %384 = vmatprep.subr.bf16.mxu0 %v379
      %385 = vmatpush1.bf16.msra.mxu0 %v376
      %386 = vmatprep.subr.bf16.mxu0 0
      %387 = vmatpush1.bf16.msra.mxu0 0
      %388 = vmatprep.subr.bf16.mxu0 0
      %389 = vmatpush1.bf16.msra.mxu0 0
      %390 = vmatprep.subr.bf16.mxu0 0
      %391 = vmatpush1.bf16.msra.mxu0 0
      %392 = vmatprep.subr.bf16.mxu0 0
      %393 = vmatpush1.bf16.msra.mxu0 0
      %394 = vmatprep.subr.bf16.mxu0 0
      %395 = vmatpush1.bf16.msra.mxu0 0
      %396 = vmatprep.subr.bf16.mxu0 0
      %397 = vmatpush1.bf16.msra.mxu0 0
      %398 = vmatprep.subr.bf16.mxu0 0
      %399 = vmatpush1.bf16.msra.mxu0 0
      %400 = vmatprep.subr.bf16.mxu0 0
      %401 = vmatpush1.bf16.msra.mxu0 0
      %402 = vmatprep.subr.bf16.mxu0 0
      %403 = vmatpush1.bf16.msra.mxu0 0
      %404 = vmatprep.subr.bf16.mxu0 0
      %405 = vmatpush1.bf16.msra.mxu0 0
      %406 = vmatprep.subr.bf16.mxu0 0
      %407 = vmatpush1.bf16.msra.mxu0 0
      %408 = vmatprep.subr.bf16.mxu0 0
      %409 = vmatpush1.bf16.msra.mxu0 0
      %410 = vmatprep.subr.bf16.mxu0 0
      %411 = vmatpush1.bf16.msra.mxu0 0
      %412 = vmatprep.subr.bf16.mxu0 0
      %413 = vmatpush1.bf16.msra.mxu0 0
      %414 = vmatprep.subr.bf16.mxu0 0
      %415 = vmatpush1.bf16.msra.mxu0 0
      %416 = vmatprep.mubr.bf16.mxu0 0
      %417 = vmatmul.mubr.bf16.gmra.mrb[0].mxu0 %v373
      %v418 = vpop.f32.mrb[0].mxu0
      %v419 = vadd.f32 %v326, %v418
      %v420 = vpop.f32.mrb[0].mxu0
      %v421 = vadd.f32 %v328, %v420
      %v422 = vpop.f32.mrb[0].mxu0
      %v423 = vpop.f32.mrb[0].mxu0
      %424 = vdwg.mxu0
      %425 = vmatprep.subr.bf16.mxu0 0
      %426 = vmatpush1.bf16.msra.mxu0 %v382
      %427 = vmatprep.subr.bf16.mxu0 0
      %428 = vmatpush1.bf16.msra.mxu0 0
      %429 = vmatprep.subr.bf16.mxu0 0
      %430 = vmatpush1.bf16.msra.mxu0 0
      %431 = vmatprep.subr.bf16.mxu0 0
      %432 = vmatpush1.bf16.msra.mxu0 0
      %433 = vmatprep.subr.bf16.mxu0 0
      %434 = vmatpush1.bf16.msra.mxu0 0
      %435 = vmatprep.subr.bf16.mxu0 0
      %436 = vmatpush1.bf16.msra.mxu0 0
      %437 = vmatprep.subr.bf16.mxu0 0
      %438 = vmatpush1.bf16.msra.mxu0 0
      %439 = vmatprep.subr.bf16.mxu0 0
      %440 = vmatpush1.bf16.msra.mxu0 0
      %441 = vmatprep.subr.bf16.mxu0 0
      %442 = vmatpush1.bf16.msra.mxu0 0
      %443 = vmatprep.subr.bf16.mxu0 0
      %444 = vmatpush1.bf16.msra.mxu0 0
      %445 = vmatprep.subr.bf16.mxu0 0
      %446 = vmatpush1.bf16.msra.mxu0 0
      %447 = vmatprep.subr.bf16.mxu0 0
      %448 = vmatpush1.bf16.msra.mxu0 0
      %449 = vmatprep.subr.bf16.mxu0 0
      %450 = vmatpush1.bf16.msra.mxu0 0
      %451 = vmatprep.subr.bf16.mxu0 0
      %452 = vmatpush1.bf16.msra.mxu0 0
      %453 = vmatprep.subr.bf16.mxu0 0
      %454 = vmatpush1.bf16.msra.mxu0 0
      %455 = vmatprep.subr.bf16.mxu0 0
      %456 = vmatpush1.bf16.msra.mxu0 0
      %457 = vmatprep.mubr.bf16.mxu0 0
      %458 = vmatmul.mubr.bf16.gmra.mrb[0].mxu0 %v373
      %v459 = vpop.f32.mrb[0].mxu0
      %v460 = vadd.f32 %v367, %v459
      %v461 = vpop.f32.mrb[0].mxu0
      %v462 = vpop.f32.mrb[0].mxu0
      %v463 = vpop.f32.mrb[0].mxu0
      %464 = vdwg.mxu0
      %v465 = vld [vmem:[%s232] sm:$0x3f]
      %s466 = scalar_lea.vmem %s1, 8
      %v467 = vld [vmem:[%s466] sm:$0xf]
      %v469 = vcombine.high %v465, %v465
      %v471 = vunpack.c.l.s4 1983009808
      %v472 = vunpack.c.0.s8 %v471
      %v473 = vlaneseq
      %v474 = vshrl.u32 %v473, 7
      %v475 = vsub.s32 %v472, %v474
      %v476 = vrot.slane %v465, %v475
      %v478 = vunpack.c.l.s4 1983009808
      %v479 = vunpack.c.0.s8 %v478
      %v480 = vlaneseq
      %v481 = vshrl.u32 %v480, 7
      %v482 = vsub.s32 %v479, %v481
      %v483 = vrot.slane %v469, %v482
      %v484 = vcombine.high %v476, %v476
      %485 = vrot.lane.b32.xlu0 %v476, 126
      %v486 = vpop.permute.xlu0 %485
      %487 = vrot.lane.b32.xlu0 %v484, 126
      %v488 = vpop.permute.xlu0 %487
      %489 = vrot.lane.b32.xlu0 %v483, 126
      %v490 = vpop.permute.xlu0 %489
      %vm491 = vcmask 1031168
      %v492 = vsel %vm491, %v486, %v488
      %v493 = vsel %vm491, %v488, %v490
      %v495 = vsel %vm277, %v467, 0
      %v498 = vsel %vm281, %v492, 0
      %v501 = vsel %vm281, %v493, 0
      %v504 = vsel %vm281, %v490, 0
      %506 = vmatprep.subr.bf16.mxu0 %v501
      %507 = vmatpush1.bf16.msra.mxu0 %v498
      %508 = vmatprep.subr.bf16.mxu0 0
      %509 = vmatpush1.bf16.msra.mxu0 0
      %510 = vmatprep.subr.bf16.mxu0 0
      %511 = vmatpush1.bf16.msra.mxu0 0
      %512 = vmatprep.subr.bf16.mxu0 0
      %513 = vmatpush1.bf16.msra.mxu0 0
      %514 = vmatprep.subr.bf16.mxu0 0
      %515 = vmatpush1.bf16.msra.mxu0 0
      %516 = vmatprep.subr.bf16.mxu0 0
      %517 = vmatpush1.bf16.msra.mxu0 0
      %518 = vmatprep.subr.bf16.mxu0 0
      %519 = vmatpush1.bf16.msra.mxu0 0
      %520 = vmatprep.subr.bf16.mxu0 0
      %521 = vmatpush1.bf16.msra.mxu0 0
      %522 = vmatprep.subr.bf16.mxu0 0
      %523 = vmatpush1.bf16.msra.mxu0 0
      %524 = vmatprep.subr.bf16.mxu0 0
      %525 = vmatpush1.bf16.msra.mxu0 0
      %526 = vmatprep.subr.bf16.mxu0 0
      %527 = vmatpush1.bf16.msra.mxu0 0
      %528 = vmatprep.subr.bf16.mxu0 0
      %529 = vmatpush1.bf16.msra.mxu0 0
      %530 = vmatprep.subr.bf16.mxu0 0
      %531 = vmatpush1.bf16.msra.mxu0 0
      %532 = vmatprep.subr.bf16.mxu0 0
      %533 = vmatpush1.bf16.msra.mxu0 0
      %534 = vmatprep.subr.bf16.mxu0 0
      %535 = vmatpush1.bf16.msra.mxu0 0
      %536 = vmatprep.subr.bf16.mxu0 0
      %537 = vmatpush1.bf16.msra.mxu0 0
      %538 = vmatprep.mubr.bf16.mxu0 0
      %539 = vmatmul.mubr.bf16.gmra.mrb[0].mxu0 %v495
      %v540 = vpop.f32.mrb[0].mxu0
      %v541 = vadd.f32 0.0, %v540
      %v542 = vpop.f32.mrb[0].mxu0
      %v543 = vadd.f32 0.0, %v542
      %v544 = vpop.f32.mrb[0].mxu0
      %v545 = vpop.f32.mrb[0].mxu0
      %546 = vdwg.mxu0
      %547 = vmatprep.subr.bf16.mxu0 0
      %548 = vmatpush1.bf16.msra.mxu0 %v504
      %549 = vmatprep.subr.bf16.mxu0 0
      %550 = vmatpush1.bf16.msra.mxu0 0
      %551 = vmatprep.subr.bf16.mxu0 0
      %552 = vmatpush1.bf16.msra.mxu0 0
      %553 = vmatprep.subr.bf16.mxu0 0
      %554 = vmatpush1.bf16.msra.mxu0 0
      %555 = vmatprep.subr.bf16.mxu0 0
      %556 = vmatpush1.bf16.msra.mxu0 0
      %557 = vmatprep.subr.bf16.mxu0 0
      %558 = vmatpush1.bf16.msra.mxu0 0
      %559 = vmatprep.subr.bf16.mxu0 0
      %560 = vmatpush1.bf16.msra.mxu0 0
      %561 = vmatprep.subr.bf16.mxu0 0
      %562 = vmatpush1.bf16.msra.mxu0 0
      %563 = vmatprep.subr.bf16.mxu0 0
      %564 = vmatpush1.bf16.msra.mxu0 0
      %565 = vmatprep.subr.bf16.mxu0 0
      %566 = vmatpush1.bf16.msra.mxu0 0
      %567 = vmatprep.subr.bf16.mxu0 0
      %568 = vmatpush1.bf16.msra.mxu0 0
      %569 = vmatprep.subr.bf16.mxu0 0
      %570 = vmatpush1.bf16.msra.mxu0 0
      %571 = vmatprep.subr.bf16.mxu0 0
      %572 = vmatpush1.bf16.msra.mxu0 0
      %573 = vmatprep.subr.bf16.mxu0 0
      %574 = vmatpush1.bf16.msra.mxu0 0
      %575 = vmatprep.subr.bf16.mxu0 0
      %576 = vmatpush1.bf16.msra.mxu0 0
      %577 = vmatprep.subr.bf16.mxu0 0
      %578 = vmatpush1.bf16.msra.mxu0 0
      %579 = vmatprep.mubr.bf16.mxu0 0
      %580 = vmatmul.mubr.bf16.gmra.mrb[0].mxu0 %v495
      %v581 = vpop.f32.mrb[0].mxu0
      %v582 = vadd.f32 0.0, %v581
      %v583 = vpop.f32.mrb[0].mxu0
      %v584 = vpop.f32.mrb[0].mxu0
      %v585 = vpop.f32.mrb[0].mxu0
      %586 = vdwg.mxu0
      %v587 = vadd.f32 %v419, %v541
      %v588 = vadd.f32 %v421, %v543
      %v589 = vadd.f32 %v460, %v582
      %v590 = vld [vmem:[%s232] sm:$0x3f]
      %s591 = scalar_lea.vmem %s1, 12
      %v592 = vld [vmem:[%s591] sm:$0xf]
      %v594 = vcombine.high %v590, %v590
      %v596 = vunpack.c.l.s4 1983009808
      %v597 = vunpack.c.0.s8 %v596
      %v598 = vlaneseq
      %v599 = vshrl.u32 %v598, 7
      %v600 = vsub.s32 %v597, %v599
      %v601 = vrot.slane %v590, %v600
      %v603 = vunpack.c.l.s4 1983009808
      %v604 = vunpack.c.0.s8 %v603
      %v605 = vlaneseq
      %v606 = vshrl.u32 %v605, 7
      %v607 = vsub.s32 %v604, %v606
      %v608 = vrot.slane %v594, %v607
      %v609 = vcombine.high %v601, %v601
      %610 = vrot.lane.b32.xlu0 %v601, 110
      %v611 = vpop.permute.xlu0 %610
      %612 = vrot.lane.b32.xlu0 %v609, 110
      %v613 = vpop.permute.xlu0 %612
      %614 = vrot.lane.b32.xlu0 %v608, 110
      %v615 = vpop.permute.xlu0 %614
      %vm616 = vcmask 900096
      %v617 = vsel %vm616, %v611, %v613
      %v618 = vsel %vm616, %v613, %v615
      %v620 = vsel %vm277, %v592, 0
      %v623 = vsel %vm281, %v617, 0
      %v626 = vsel %vm281, %v618, 0
      %v629 = vsel %vm281, %v615, 0
      %631 = vmatprep.subr.bf16.mxu0 %v626
      %632 = vmatpush1.bf16.msra.mxu0 %v623
      %633 = vmatprep.subr.bf16.mxu0 0
      %634 = vmatpush1.bf16.msra.mxu0 0
      %635 = vmatprep.subr.bf16.mxu0 0
      %636 = vmatpush1.bf16.msra.mxu0 0
      %637 = vmatprep.subr.bf16.mxu0 0
      %638 = vmatpush1.bf16.msra.mxu0 0
      %639 = vmatprep.subr.bf16.mxu0 0
      %640 = vmatpush1.bf16.msra.mxu0 0
      %641 = vmatprep.subr.bf16.mxu0 0
      %642 = vmatpush1.bf16.msra.mxu0 0
      %643 = vmatprep.subr.bf16.mxu0 0
      %644 = vmatpush1.bf16.msra.mxu0 0
      %645 = vmatprep.subr.bf16.mxu0 0
      %646 = vmatpush1.bf16.msra.mxu0 0
      %647 = vmatprep.subr.bf16.mxu0 0
      %648 = vmatpush1.bf16.msra.mxu0 0
      %649 = vmatprep.subr.bf16.mxu0 0
      %650 = vmatpush1.bf16.msra.mxu0 0
      %651 = vmatprep.subr.bf16.mxu0 0
      %652 = vmatpush1.bf16.msra.mxu0 0
      %653 = vmatprep.subr.bf16.mxu0 0
      %654 = vmatpush1.bf16.msra.mxu0 0
      %655 = vmatprep.subr.bf16.mxu0 0
      %656 = vmatpush1.bf16.msra.mxu0 0
      %657 = vmatprep.subr.bf16.mxu0 0
      %658 = vmatpush1.bf16.msra.mxu0 0
      %659 = vmatprep.subr.bf16.mxu0 0
      %660 = vmatpush1.bf16.msra.mxu0 0
      %661 = vmatprep.subr.bf16.mxu0 0
      %662 = vmatpush1.bf16.msra.mxu0 0
      %663 = vmatprep.mubr.bf16.mxu0 0
      %664 = vmatmul.mubr.bf16.gmra.mrb[0].mxu0 %v620
      %v665 = vpop.f32.mrb[0].mxu0
      %v666 = vadd.f32 0.0, %v665
      %v667 = vpop.f32.mrb[0].mxu0
      %v668 = vadd.f32 0.0, %v667
      %v669 = vpop.f32.mrb[0].mxu0
      %v670 = vpop.f32.mrb[0].mxu0
      %671 = vdwg.mxu0
      %672 = vmatprep.subr.bf16.mxu0 0
      %673 = vmatpush1.bf16.msra.mxu0 %v629
      %674 = vmatprep.subr.bf16.mxu0 0
      %675 = vmatpush1.bf16.msra.mxu0 0
      %676 = vmatprep.subr.bf16.mxu0 0
      %677 = vmatpush1.bf16.msra.mxu0 0
      %678 = vmatprep.subr.bf16.mxu0 0
      %679 = vmatpush1.bf16.msra.mxu0 0
      %680 = vmatprep.subr.bf16.mxu0 0
      %681 = vmatpush1.bf16.msra.mxu0 0
      %682 = vmatprep.subr.bf16.mxu0 0
      %683 = vmatpush1.bf16.msra.mxu0 0
      %684 = vmatprep.subr.bf16.mxu0 0
      %685 = vmatpush1.bf16.msra.mxu0 0
      %686 = vmatprep.subr.bf16.mxu0 0
      %687 = vmatpush1.bf16.msra.mxu0 0
      %688 = vmatprep.subr.bf16.mxu0 0
      %689 = vmatpush1.bf16.msra.mxu0 0
      %690 = vmatprep.subr.bf16.mxu0 0
      %691 = vmatpush1.bf16.msra.mxu0 0
      %692 = vmatprep.subr.bf16.mxu0 0
      %693 = vmatpush1.bf16.msra.mxu0 0
      %694 = vmatprep.subr.bf16.mxu0 0
      %695 = vmatpush1.bf16.msra.mxu0 0
      %696 = vmatprep.subr.bf16.mxu0 0
      %697 = vmatpush1.bf16.msra.mxu0 0
      %698 = vmatprep.subr.bf16.mxu0 0
      %699 = vmatpush1.bf16.msra.mxu0 0
      %700 = vmatprep.subr.bf16.mxu0 0
      %701 = vmatpush1.bf16.msra.mxu0 0
      %702 = vmatprep.subr.bf16.mxu0 0
      %703 = vmatpush1.bf16.msra.mxu0 0
      %704 = vmatprep.mubr.bf16.mxu0 0
      %705 = vmatmul.mubr.bf16.gmra.mrb[0].mxu0 %v620
      %v706 = vpop.f32.mrb[0].mxu0
      %v707 = vadd.f32 0.0, %v706
      %v708 = vpop.f32.mrb[0].mxu0
      %v709 = vpop.f32.mrb[0].mxu0
      %v710 = vpop.f32.mrb[0].mxu0
      %711 = vdwg.mxu0
      %v712 = vadd.f32 %v587, %v666
      %v713 = vadd.f32 %v588, %v668
      %v714 = vadd.f32 %v589, %v707
      %v715 = vld [vmem:[%s232] sm:$0x3f]
      %s716 = scalar_lea.vmem %s1, 16
      %v717 = vld [vmem:[%s716] sm:$0xf]
      %v719 = vcombine.high %v715, %v715
      %v721 = vunpack.c.l.s4 1983009808
      %v722 = vunpack.c.0.s8 %v721
      %v723 = vlaneseq
      %v724 = vshrl.u32 %v723, 7
      %v725 = vsub.s32 %v722, %v724
      %v726 = vrot.slane %v715, %v725
      %v728 = vunpack.c.l.s4 1983009808
      %v729 = vunpack.c.0.s8 %v728
      %v730 = vlaneseq
      %v731 = vshrl.u32 %v730, 7
      %v732 = vsub.s32 %v729, %v731
      %v733 = vrot.slane %v719, %v732
      %v734 = vcombine.high %v726, %v726
      %735 = vrot.lane.b32.xlu0 %v726, 109
      %v736 = vpop.permute.xlu0 %735
      %737 = vrot.lane.b32.xlu0 %v734, 109
      %v738 = vpop.permute.xlu0 %737
      %739 = vrot.lane.b32.xlu0 %v733, 109
      %v740 = vpop.permute.xlu0 %739
      %vm741 = vcmask 891904
      %v742 = vsel %vm741, %v736, %v738
      %v743 = vsel %vm741, %v738, %v740
      %v745 = vsel %vm277, %v717, 0
      %v748 = vsel %vm281, %v742, 0
      %v751 = vsel %vm281, %v743, 0
      %v754 = vsel %vm281, %v740, 0
      %756 = vmatprep.subr.bf16.mxu0 %v751
      %757 = vmatpush1.bf16.msra.mxu0 %v748
      %758 = vmatprep.subr.bf16.mxu0 0
      %759 = vmatpush1.bf16.msra.mxu0 0
      %760 = vmatprep.subr.bf16.mxu0 0
      %761 = vmatpush1.bf16.msra.mxu0 0
      %762 = vmatprep.subr.bf16.mxu0 0
      %763 = vmatpush1.bf16.msra.mxu0 0
      %764 = vmatprep.subr.bf16.mxu0 0
      %765 = vmatpush1.bf16.msra.mxu0 0
      %766 = vmatprep.subr.bf16.mxu0 0
      %767 = vmatpush1.bf16.msra.mxu0 0
      %768 = vmatprep.subr.bf16.mxu0 0
      %769 = vmatpush1.bf16.msra.mxu0 0
      %770 = vmatprep.subr.bf16.mxu0 0
      %771 = vmatpush1.bf16.msra.mxu0 0
      %772 = vmatprep.subr.bf16.mxu0 0
      %773 = vmatpush1.bf16.msra.mxu0 0
      %774 = vmatprep.subr.bf16.mxu0 0
      %775 = vmatpush1.bf16.msra.mxu0 0
      %776 = vmatprep.subr.bf16.mxu0 0
      %777 = vmatpush1.bf16.msra.mxu0 0
      %778 = vmatprep.subr.bf16.mxu0 0
      %779 = vmatpush1.bf16.msra.mxu0 0
      %780 = vmatprep.subr.bf16.mxu0 0
      %781 = vmatpush1.bf16.msra.mxu0 0
      %782 = vmatprep.subr.bf16.mxu0 0
      %783 = vmatpush1.bf16.msra.mxu0 0
      %784 = vmatprep.subr.bf16.mxu0 0
      %785 = vmatpush1.bf16.msra.mxu0 0
      %786 = vmatprep.subr.bf16.mxu0 0
      %787 = vmatpush1.bf16.msra.mxu0 0
      %788 = vmatprep.mubr.bf16.mxu0 0
      %789 = vmatmul.mubr.bf16.gmra.mrb[0].mxu0 %v745
      %v790 = vpop.f32.mrb[0].mxu0
      %v791 = vadd.f32 0.0, %v790
      %v792 = vpop.f32.mrb[0].mxu0
      %v793 = vadd.f32 0.0, %v792
      %v794 = vpop.f32.mrb[0].mxu0
      %v795 = vpop.f32.mrb[0].mxu0
      %796 = vdwg.mxu0
      %797 = vmatprep.subr.bf16.mxu0 0
      %798 = vmatpush1.bf16.msra.mxu0 %v754
      %799 = vmatprep.subr.bf16.mxu0 0
      %800 = vmatpush1.bf16.msra.mxu0 0
      %801 = vmatprep.subr.bf16.mxu0 0
      %802 = vmatpush1.bf16.msra.mxu0 0
      %803 = vmatprep.subr.bf16.mxu0 0
      %804 = vmatpush1.bf16.msra.mxu0 0
      %805 = vmatprep.subr.bf16.mxu0 0
      %806 = vmatpush1.bf16.msra.mxu0 0
      %807 = vmatprep.subr.bf16.mxu0 0
      %808 = vmatpush1.bf16.msra.mxu0 0
      %809 = vmatprep.subr.bf16.mxu0 0
      %810 = vmatpush1.bf16.msra.mxu0 0
      %811 = vmatprep.subr.bf16.mxu0 0
      %812 = vmatpush1.bf16.msra.mxu0 0
      %813 = vmatprep.subr.bf16.mxu0 0
      %814 = vmatpush1.bf16.msra.mxu0 0
      %815 = vmatprep.subr.bf16.mxu0 0
      %816 = vmatpush1.bf16.msra.mxu0 0
      %817 = vmatprep.subr.bf16.mxu0 0
      %818 = vmatpush1.bf16.msra.mxu0 0
      %819 = vmatprep.subr.bf16.mxu0 0
      %820 = vmatpush1.bf16.msra.mxu0 0
      %821 = vmatprep.subr.bf16.mxu0 0
      %822 = vmatpush1.bf16.msra.mxu0 0
      %823 = vmatprep.subr.bf16.mxu0 0
      %824 = vmatpush1.bf16.msra.mxu0 0
      %825 = vmatprep.subr.bf16.mxu0 0
      %826 = vmatpush1.bf16.msra.mxu0 0
      %827 = vmatprep.subr.bf16.mxu0 0
      %828 = vmatpush1.bf16.msra.mxu0 0
      %829 = vmatprep.mubr.bf16.mxu0 0
      %830 = vmatmul.mubr.bf16.gmra.mrb[0].mxu0 %v745
      %v831 = vpop.f32.mrb[0].mxu0
      %v832 = vadd.f32 0.0, %v831
      %v833 = vpop.f32.mrb[0].mxu0
      %v834 = vpop.f32.mrb[0].mxu0
      %v835 = vpop.f32.mrb[0].mxu0
      %836 = vdwg.mxu0
      %v837 = vadd.f32 %v712, %v791
      %v838 = vadd.f32 %v713, %v793
      %v839 = vadd.f32 %v714, %v832
      %v840 = vld [vmem:[%s232] sm:$0x3f]
      %s841 = scalar_lea.vmem %s1, 20
      %v842 = vld [vmem:[%s841] sm:$0xf]
      %v844 = vcombine.high %v840, %v840
      %v846 = vunpack.c.l.s4 1983009808
      %v847 = vunpack.c.0.s8 %v846
      %v848 = vlaneseq
      %v849 = vshrl.u32 %v848, 7
      %v850 = vsub.s32 %v847, %v849
      %v851 = vrot.slane %v840, %v850
      %v853 = vunpack.c.l.s4 1983009808
      %v854 = vunpack.c.0.s8 %v853
      %v855 = vlaneseq
      %v856 = vshrl.u32 %v855, 7
      %v857 = vsub.s32 %v854, %v856
      %v858 = vrot.slane %v844, %v857
      %v859 = vcombine.high %v851, %v851
      %860 = vrot.lane.b32.xlu0 %v851, 108
      %v861 = vpop.permute.xlu0 %860
      %862 = vrot.lane.b32.xlu0 %v859, 108
      %v863 = vpop.permute.xlu0 %862
      %864 = vrot.lane.b32.xlu0 %v858, 108
      %v865 = vpop.permute.xlu0 %864
      %vm866 = vcmask 883712
      %v867 = vsel %vm866, %v861, %v863
      %v868 = vsel %vm866, %v863, %v865
      %v870 = vsel %vm277, %v842, 0
      %v873 = vsel %vm281, %v867, 0
      %v876 = vsel %vm281, %v868, 0
      %v879 = vsel %vm281, %v865, 0
      %881 = vmatprep.subr.bf16.mxu0 %v876
      %882 = vmatpush1.bf16.msra.mxu0 %v873
      %883 = vmatprep.subr.bf16.mxu0 0
      %884 = vmatpush1.bf16.msra.mxu0 0
      %885 = vmatprep.subr.bf16.mxu0 0
      %886 = vmatpush1.bf16.msra.mxu0 0
      %887 = vmatprep.subr.bf16.mxu0 0
      %888 = vmatpush1.bf16.msra.mxu0 0
      %889 = vmatprep.subr.bf16.mxu0 0
      %890 = vmatpush1.bf16.msra.mxu0 0
      %891 = vmatprep.subr.bf16.mxu0 0
      %892 = vmatpush1.bf16.msra.mxu0 0
      %893 = vmatprep.subr.bf16.mxu0 0
      %894 = vmatpush1.bf16.msra.mxu0 0
      %895 = vmatprep.subr.bf16.mxu0 0
      %896 = vmatpush1.bf16.msra.mxu0 0
      %897 = vmatprep.subr.bf16.mxu0 0
      %898 = vmatpush1.bf16.msra.mxu0 0
      %899 = vmatprep.subr.bf16.mxu0 0
      %900 = vmatpush1.bf16.msra.mxu0 0
      %901 = vmatprep.subr.bf16.mxu0 0
      %902 = vmatpush1.bf16.msra.mxu0 0
      %903 = vmatprep.subr.bf16.mxu0 0
      %904 = vmatpush1.bf16.msra.mxu0 0
      %905 = vmatprep.subr.bf16.mxu0 0
      %906 = vmatpush1.bf16.msra.mxu0 0
      %907 = vmatprep.subr.bf16.mxu0 0
      %908 = vmatpush1.bf16.msra.mxu0 0
      %909 = vmatprep.subr.bf16.mxu0 0
      %910 = vmatpush1.bf16.msra.mxu0 0
      %911 = vmatprep.subr.bf16.mxu0 0
      %912 = vmatpush1.bf16.msra.mxu0 0
      %913 = vmatprep.mubr.bf16.mxu0 0
      %914 = vmatmul.mubr.bf16.gmra.mrb[0].mxu0 %v870
      %v915 = vpop.f32.mrb[0].mxu0
      %v916 = vadd.f32 0.0, %v915
      %v917 = vpop.f32.mrb[0].mxu0
      %v918 = vadd.f32 0.0, %v917
      %v919 = vpop.f32.mrb[0].mxu0
      %v920 = vpop.f32.mrb[0].mxu0
      %921 = vdwg.mxu0
      %922 = vmatprep.subr.bf16.mxu0 0
      %923 = vmatpush1.bf16.msra.mxu0 %v879
      %924 = vmatprep.subr.bf16.mxu0 0
      %925 = vmatpush1.bf16.msra.mxu0 0
      %926 = vmatprep.subr.bf16.mxu0 0
      %927 = vmatpush1.bf16.msra.mxu0 0
      %928 = vmatprep.subr.bf16.mxu0 0
      %929 = vmatpush1.bf16.msra.mxu0 0
      %930 = vmatprep.subr.bf16.mxu0 0
      %931 = vmatpush1.bf16.msra.mxu0 0
      %932 = vmatprep.subr.bf16.mxu0 0
      %933 = vmatpush1.bf16.msra.mxu0 0
      %934 = vmatprep.subr.bf16.mxu0 0
      %935 = vmatpush1.bf16.msra.mxu0 0
      %936 = vmatprep.subr.bf16.mxu0 0
      %937 = vmatpush1.bf16.msra.mxu0 0
      %938 = vmatprep.subr.bf16.mxu0 0
      %939 = vmatpush1.bf16.msra.mxu0 0
      %940 = vmatprep.subr.bf16.mxu0 0
      %941 = vmatpush1.bf16.msra.mxu0 0
      %942 = vmatprep.subr.bf16.mxu0 0
      %943 = vmatpush1.bf16.msra.mxu0 0
      %944 = vmatprep.subr.bf16.mxu0 0
      %945 = vmatpush1.bf16.msra.mxu0 0
      %946 = vmatprep.subr.bf16.mxu0 0
      %947 = vmatpush1.bf16.msra.mxu0 0
      %948 = vmatprep.subr.bf16.mxu0 0
      %949 = vmatpush1.bf16.msra.mxu0 0
      %950 = vmatprep.subr.bf16.mxu0 0
      %951 = vmatpush1.bf16.msra.mxu0 0
      %952 = vmatprep.subr.bf16.mxu0 0
      %953 = vmatpush1.bf16.msra.mxu0 0
      %954 = vmatprep.mubr.bf16.mxu0 0
      %955 = vmatmul.mubr.bf16.gmra.mrb[0].mxu0 %v870
      %v956 = vpop.f32.mrb[0].mxu0
      %v957 = vadd.f32 0.0, %v956
      %v958 = vpop.f32.mrb[0].mxu0
      %v959 = vpop.f32.mrb[0].mxu0
      %v960 = vpop.f32.mrb[0].mxu0
      %961 = vdwg.mxu0
      %v962 = vadd.f32 %v837, %v916
      %v963 = vadd.f32 %v838, %v918
      %v964 = vadd.f32 %v839, %v957
      %v965 = vld [vmem:[%s232] sm:$0x3f]
      %s966 = scalar_lea.vmem %s1, 24
      %v967 = vld [vmem:[%s966] sm:$0xf]
      %v969 = vcombine.high %v965, %v965
      %v971 = vunpack.c.l.s4 1983009808
      %v972 = vunpack.c.0.s8 %v971
      %v973 = vlaneseq
      %v974 = vshrl.u32 %v973, 7
      %v975 = vsub.s32 %v972, %v974
      %v976 = vrot.slane %v965, %v975
      %v978 = vunpack.c.l.s4 1983009808
      %v979 = vunpack.c.0.s8 %v978
      %v980 = vlaneseq
      %v981 = vshrl.u32 %v980, 7
      %v982 = vsub.s32 %v979, %v981
      %v983 = vrot.slane %v969, %v982
      %v984 = vcombine.high %v976, %v976
      %985 = vrot.lane.b32.xlu0 %v976, 92
      %v986 = vpop.permute.xlu0 %985
      %987 = vrot.lane.b32.xlu0 %v984, 92
      %v988 = vpop.permute.xlu0 %987
      %989 = vrot.lane.b32.xlu0 %v983, 92
      %v990 = vpop.permute.xlu0 %989
      %vm991 = vcmask 752640
      %v992 = vsel %vm991, %v986, %v988
      %v993 = vsel %vm991, %v988, %v990
      %v995 = vsel %vm277, %v967, 0
      %v998 = vsel %vm281, %v992, 0
      %v1001 = vsel %vm281, %v993, 0
      %v1004 = vsel %vm281, %v990, 0
      %1006 = vmatprep.subr.bf16.mxu0 %v1001
      %1007 = vmatpush1.bf16.msra.mxu0 %v998
      %1008 = vmatprep.subr.bf16.mxu0 0
      %1009 = vmatpush1.bf16.msra.mxu0 0
      %1010 = vmatprep.subr.bf16.mxu0 0
      %1011 = vmatpush1.bf16.msra.mxu0 0
      %1012 = vmatprep.subr.bf16.mxu0 0
      %1013 = vmatpush1.bf16.msra.mxu0 0
      %1014 = vmatprep.subr.bf16.mxu0 0
      %1015 = vmatpush1.bf16.msra.mxu0 0
      %1016 = vmatprep.subr.bf16.mxu0 0
      %1017 = vmatpush1.bf16.msra.mxu0 0
      %1018 = vmatprep.subr.bf16.mxu0 0
      %1019 = vmatpush1.bf16.msra.mxu0 0
      %1020 = vmatprep.subr.bf16.mxu0 0
      %1021 = vmatpush1.bf16.msra.mxu0 0
      %1022 = vmatprep.subr.bf16.mxu0 0
      %1023 = vmatpush1.bf16.msra.mxu0 0
      %1024 = vmatprep.subr.bf16.mxu0 0
      %1025 = vmatpush1.bf16.msra.mxu0 0
      %1026 = vmatprep.subr.bf16.mxu0 0
      %1027 = vmatpush1.bf16.msra.mxu0 0
      %1028 = vmatprep.subr.bf16.mxu0 0
      %1029 = vmatpush1.bf16.msra.mxu0 0
      %1030 = vmatprep.subr.bf16.mxu0 0
      %1031 = vmatpush1.bf16.msra.mxu0 0
      %1032 = vmatprep.subr.bf16.mxu0 0
      %1033 = vmatpush1.bf16.msra.mxu0 0
      %1034 = vmatprep.subr.bf16.mxu0 0
      %1035 = vmatpush1.bf16.msra.mxu0 0
      %1036 = vmatprep.subr.bf16.mxu0 0
      %1037 = vmatpush1.bf16.msra.mxu0 0
      %1038 = vmatprep.mubr.bf16.mxu0 0
      %1039 = vmatmul.mubr.bf16.gmra.mrb[0].mxu0 %v995
      %v1040 = vpop.f32.mrb[0].mxu0
      %v1041 = vadd.f32 0.0, %v1040
      %v1042 = vpop.f32.mrb[0].mxu0
      %v1043 = vadd.f32 0.0, %v1042
      %v1044 = vpop.f32.mrb[0].mxu0
      %v1045 = vpop.f32.mrb[0].mxu0
      %1046 = vdwg.mxu0
      %1047 = vmatprep.subr.bf16.mxu0 0
      %1048 = vmatpush1.bf16.msra.mxu0 %v1004
      %1049 = vmatprep.subr.bf16.mxu0 0
      %1050 = vmatpush1.bf16.msra.mxu0 0
      %1051 = vmatprep.subr.bf16.mxu0 0
      %1052 = vmatpush1.bf16.msra.mxu0 0
      %1053 = vmatprep.subr.bf16.mxu0 0
      %1054 = vmatpush1.bf16.msra.mxu0 0
      %1055 = vmatprep.subr.bf16.mxu0 0
      %1056 = vmatpush1.bf16.msra.mxu0 0
      %1057 = vmatprep.subr.bf16.mxu0 0
      %1058 = vmatpush1.bf16.msra.mxu0 0
      %1059 = vmatprep.subr.bf16.mxu0 0
      %1060 = vmatpush1.bf16.msra.mxu0 0
      %1061 = vmatprep.subr.bf16.mxu0 0
      %1062 = vmatpush1.bf16.msra.mxu0 0
      %1063 = vmatprep.subr.bf16.mxu0 0
      %1064 = vmatpush1.bf16.msra.mxu0 0
      %1065 = vmatprep.subr.bf16.mxu0 0
      %1066 = vmatpush1.bf16.msra.mxu0 0
      %1067 = vmatprep.subr.bf16.mxu0 0
      %1068 = vmatpush1.bf16.msra.mxu0 0
      %1069 = vmatprep.subr.bf16.mxu0 0
      %1070 = vmatpush1.bf16.msra.mxu0 0
      %1071 = vmatprep.subr.bf16.mxu0 0
      %1072 = vmatpush1.bf16.msra.mxu0 0
      %1073 = vmatprep.subr.bf16.mxu0 0
      %1074 = vmatpush1.bf16.msra.mxu0 0
      %1075 = vmatprep.subr.bf16.mxu0 0
      %1076 = vmatpush1.bf16.msra.mxu0 0
      %1077 = vmatprep.subr.bf16.mxu0 0
      %1078 = vmatpush1.bf16.msra.mxu0 0
      %1079 = vmatprep.mubr.bf16.mxu0 0
      %1080 = vmatmul.mubr.bf16.gmra.mrb[0].mxu0 %v995
      %v1081 = vpop.f32.mrb[0].mxu0
      %v1082 = vadd.f32 0.0, %v1081
      %v1083 = vpop.f32.mrb[0].mxu0
      %v1084 = vpop.f32.mrb[0].mxu0
      %v1085 = vpop.f32.mrb[0].mxu0
      %1086 = vdwg.mxu0
      %v1087 = vadd.f32 %v962, %v1041
      %v1088 = vadd.f32 %v963, %v1043
      %v1089 = vadd.f32 %v964, %v1082
      %v1090 = vld [vmem:[%s232] sm:$0x3f]
      %s1091 = scalar_lea.vmem %s1, 28
      %v1092 = vld [vmem:[%s1091] sm:$0xf]
      %v1094 = vcombine.high %v1090, %v1090
      %v1096 = vunpack.c.l.s4 1983009808
      %v1097 = vunpack.c.0.s8 %v1096
      %v1098 = vlaneseq
      %v1099 = vshrl.u32 %v1098, 7
      %v1100 = vsub.s32 %v1097, %v1099
      %v1101 = vrot.slane %v1090, %v1100
      %v1103 = vunpack.c.l.s4 1983009808
      %v1104 = vunpack.c.0.s8 %v1103
      %v1105 = vlaneseq
      %v1106 = vshrl.u32 %v1105, 7
      %v1107 = vsub.s32 %v1104, %v1106
      %v1108 = vrot.slane %v1094, %v1107
      %v1109 = vcombine.high %v1101, %v1101
      %1110 = vrot.lane.b32.xlu0 %v1101, 91
      %v1111 = vpop.permute.xlu0 %1110
      %1112 = vrot.lane.b32.xlu0 %v1109, 91
      %v1113 = vpop.permute.xlu0 %1112
      %1114 = vrot.lane.b32.xlu0 %v1108, 91
      %v1115 = vpop.permute.xlu0 %1114
      %vm1116 = vcmask 744448
      %v1117 = vsel %vm1116, %v1111, %v1113
      %v1118 = vsel %vm1116, %v1113, %v1115
      %v1120 = vsel %vm277, %v1092, 0
      %v1123 = vsel %vm281, %v1117, 0
      %v1126 = vsel %vm281, %v1118, 0
      %v1129 = vsel %vm281, %v1115, 0
      %1131 = vmatprep.subr.bf16.mxu0 %v1126
      %1132 = vmatpush1.bf16.msra.mxu0 %v1123
      %1133 = vmatprep.subr.bf16.mxu0 0
      %1134 = vmatpush1.bf16.msra.mxu0 0
      %1135 = vmatprep.subr.bf16.mxu0 0
      %1136 = vmatpush1.bf16.msra.mxu0 0
      %1137 = vmatprep.subr.bf16.mxu0 0
      %1138 = vmatpush1.bf16.msra.mxu0 0
      %1139 = vmatprep.subr.bf16.mxu0 0
      %1140 = vmatpush1.bf16.msra.mxu0 0
      %1141 = vmatprep.subr.bf16.mxu0 0
      %1142 = vmatpush1.bf16.msra.mxu0 0
      %1143 = vmatprep.subr.bf16.mxu0 0
      %1144 = vmatpush1.bf16.msra.mxu0 0
      %1145 = vmatprep.subr.bf16.mxu0 0
      %1146 = vmatpush1.bf16.msra.mxu0 0
      %1147 = vmatprep.subr.bf16.mxu0 0
      %1148 = vmatpush1.bf16.msra.mxu0 0
      %1149 = vmatprep.subr.bf16.mxu0 0
      %1150 = vmatpush1.bf16.msra.mxu0 0
      %1151 = vmatprep.subr.bf16.mxu0 0
      %1152 = vmatpush1.bf16.msra.mxu0 0
      %1153 = vmatprep.subr.bf16.mxu0 0
      %1154 = vmatpush1.bf16.msra.mxu0 0
      %1155 = vmatprep.subr.bf16.mxu0 0
      %1156 = vmatpush1.bf16.msra.mxu0 0
      %1157 = vmatprep.subr.bf16.mxu0 0
      %1158 = vmatpush1.bf16.msra.mxu0 0
      %1159 = vmatprep.subr.bf16.mxu0 0
      %1160 = vmatpush1.bf16.msra.mxu0 0
      %1161 = vmatprep.subr.bf16.mxu0 0
      %1162 = vmatpush1.bf16.msra.mxu0 0
      %1163 = vmatprep.mubr.bf16.mxu0 0
      %1164 = vmatmul.mubr.bf16.gmra.mrb[0].mxu0 %v1120
      %v1165 = vpop.f32.mrb[0].mxu0
      %v1166 = vadd.f32 0.0, %v1165
      %v1167 = vpop.f32.mrb[0].mxu0
      %v1168 = vadd.f32 0.0, %v1167
      %v1169 = vpop.f32.mrb[0].mxu0
      %v1170 = vpop.f32.mrb[0].mxu0
      %1171 = vdwg.mxu0
      %1172 = vmatprep.subr.bf16.mxu0 0
      %1173 = vmatpush1.bf16.msra.mxu0 %v1129
      %1174 = vmatprep.subr.bf16.mxu0 0
      %1175 = vmatpush1.bf16.msra.mxu0 0
      %1176 = vmatprep.subr.bf16.mxu0 0
      %1177 = vmatpush1.bf16.msra.mxu0 0
      %1178 = vmatprep.subr.bf16.mxu0 0
      %1179 = vmatpush1.bf16.msra.mxu0 0
      %1180 = vmatprep.subr.bf16.mxu0 0
      %1181 = vmatpush1.bf16.msra.mxu0 0
      %1182 = vmatprep.subr.bf16.mxu0 0
      %1183 = vmatpush1.bf16.msra.mxu0 0
      %1184 = vmatprep.subr.bf16.mxu0 0
      %1185 = vmatpush1.bf16.msra.mxu0 0
      %1186 = vmatprep.subr.bf16.mxu0 0
      %1187 = vmatpush1.bf16.msra.mxu0 0
      %1188 = vmatprep.subr.bf16.mxu0 0
      %1189 = vmatpush1.bf16.msra.mxu0 0
      %1190 = vmatprep.subr.bf16.mxu0 0
      %1191 = vmatpush1.bf16.msra.mxu0 0
      %1192 = vmatprep.subr.bf16.mxu0 0
      %1193 = vmatpush1.bf16.msra.mxu0 0
      %1194 = vmatprep.subr.bf16.mxu0 0
      %1195 = vmatpush1.bf16.msra.mxu0 0
      %1196 = vmatprep.subr.bf16.mxu0 0
      %1197 = vmatpush1.bf16.msra.mxu0 0
      %1198 = vmatprep.subr.bf16.mxu0 0
      %1199 = vmatpush1.bf16.msra.mxu0 0
      %1200 = vmatprep.subr.bf16.mxu0 0
      %1201 = vmatpush1.bf16.msra.mxu0 0
      %1202 = vmatprep.subr.bf16.mxu0 0
      %1203 = vmatpush1.bf16.msra.mxu0 0
      %1204 = vmatprep.mubr.bf16.mxu0 0
      %1205 = vmatmul.mubr.bf16.gmra.mrb[0].mxu0 %v1120
      %v1206 = vpop.f32.mrb[0].mxu0
      %v1207 = vadd.f32 0.0, %v1206
      %v1208 = vpop.f32.mrb[0].mxu0
      %v1209 = vpop.f32.mrb[0].mxu0
      %v1210 = vpop.f32.mrb[0].mxu0
      %1211 = vdwg.mxu0
      %v1212 = vadd.f32 %v1087, %v1166
      %v1213 = vadd.f32 %v1088, %v1168
      %v1214 = vadd.f32 %v1089, %v1207
      %v1215 = vld [vmem:[%s232] sm:$0x3f]
      %s1216 = scalar_lea.vmem %s1, 32
      %v1217 = vld [vmem:[%s1216] sm:$0xf]
      %v1219 = vcombine.high %v1215, %v1215
      %v1221 = vunpack.c.l.s4 1983009808
      %v1222 = vunpack.c.0.s8 %v1221
      %v1223 = vlaneseq
      %v1224 = vshrl.u32 %v1223, 7
      %v1225 = vsub.s32 %v1222, %v1224
      %v1226 = vrot.slane %v1215, %v1225
      %v1228 = vunpack.c.l.s4 1983009808
      %v1229 = vunpack.c.0.s8 %v1228
      %v1230 = vlaneseq
      %v1231 = vshrl.u32 %v1230, 7
      %v1232 = vsub.s32 %v1229, %v1231
      %v1233 = vrot.slane %v1219, %v1232
      %v1234 = vcombine.high %v1226, %v1226
      %1235 = vrot.lane.b32.xlu0 %v1226, 90
      %v1236 = vpop.permute.xlu0 %1235
      %1237 = vrot.lane.b32.xlu0 %v1234, 90
      %v1238 = vpop.permute.xlu0 %1237
      %1239 = vrot.lane.b32.xlu0 %v1233, 90
      %v1240 = vpop.permute.xlu0 %1239
      %vm1241 = vcmask 736256
      %v1242 = vsel %vm1241, %v1236, %v1238
      %v1243 = vsel %vm1241, %v1238, %v1240
      %v1245 = vsel %vm277, %v1217, 0
      %v1248 = vsel %vm281, %v1242, 0
      %v1251 = vsel %vm281, %v1243, 0
      %v1254 = vsel %vm281, %v1240, 0
      %1256 = vmatprep.subr.bf16.mxu0 %v1251
      %1257 = vmatpush1.bf16.msra.mxu0 %v1248
      %1258 = vmatprep.subr.bf16.mxu0 0
      %1259 = vmatpush1.bf16.msra.mxu0 0
      %1260 = vmatprep.subr.bf16.mxu0 0
      %1261 = vmatpush1.bf16.msra.mxu0 0
      %1262 = vmatprep.subr.bf16.mxu0 0
      %1263 = vmatpush1.bf16.msra.mxu0 0
      %1264 = vmatprep.subr.bf16.mxu0 0
      %1265 = vmatpush1.bf16.msra.mxu0 0
      %1266 = vmatprep.subr.bf16.mxu0 0
      %1267 = vmatpush1.bf16.msra.mxu0 0
      %1268 = vmatprep.subr.bf16.mxu0 0
      %1269 = vmatpush1.bf16.msra.mxu0 0
      %1270 = vmatprep.subr.bf16.mxu0 0
      %1271 = vmatpush1.bf16.msra.mxu0 0
      %1272 = vmatprep.subr.bf16.mxu0 0
      %1273 = vmatpush1.bf16.msra.mxu0 0
      %1274 = vmatprep.subr.bf16.mxu0 0
      %1275 = vmatpush1.bf16.msra.mxu0 0
      %1276 = vmatprep.subr.bf16.mxu0 0
      %1277 = vmatpush1.bf16.msra.mxu0 0
      %1278 = vmatprep.subr.bf16.mxu0 0
      %1279 = vmatpush1.bf16.msra.mxu0 0
      %1280 = vmatprep.subr.bf16.mxu0 0
      %1281 = vmatpush1.bf16.msra.mxu0 0
      %1282 = vmatprep.subr.bf16.mxu0 0
      %1283 = vmatpush1.bf16.msra.mxu0 0
      %1284 = vmatprep.subr.bf16.mxu0 0
      %1285 = vmatpush1.bf16.msra.mxu0 0
      %1286 = vmatprep.subr.bf16.mxu0 0
      %1287 = vmatpush1.bf16.msra.mxu0 0
      %1288 = vmatprep.mubr.bf16.mxu0 0
      %1289 = vmatmul.mubr.bf16.gmra.mrb[0].mxu0 %v1245
      %v1290 = vpop.f32.mrb[0].mxu0
      %v1291 = vadd.f32 0.0, %v1290
      %v1292 = vpop.f32.mrb[0].mxu0
      %v1293 = vadd.f32 0.0, %v1292
      %v1294 = vpop.f32.mrb[0].mxu0
      %v1295 = vpop.f32.mrb[0].mxu0
      %1296 = vdwg.mxu0
      %1297 = vmatprep.subr.bf16.mxu0 0
      %1298 = vmatpush1.bf16.msra.mxu0 %v1254
      %1299 = vmatprep.subr.bf16.mxu0 0
      %1300 = vmatpush1.bf16.msra.mxu0 0
      %1301 = vmatprep.subr.bf16.mxu0 0
      %1302 = vmatpush1.bf16.msra.mxu0 0
      %1303 = vmatprep.subr.bf16.mxu0 0
      %1304 = vmatpush1.bf16.msra.mxu0 0
      %1305 = vmatprep.subr.bf16.mxu0 0
      %1306 = vmatpush1.bf16.msra.mxu0 0
      %1307 = vmatprep.subr.bf16.mxu0 0
      %1308 = vmatpush1.bf16.msra.mxu0 0
      %1309 = vmatprep.subr.bf16.mxu0 0
      %1310 = vmatpush1.bf16.msra.mxu0 0
      %1311 = vmatprep.subr.bf16.mxu0 0
      %1312 = vmatpush1.bf16.msra.mxu0 0
      %1313 = vmatprep.subr.bf16.mxu0 0
      %1314 = vmatpush1.bf16.msra.mxu0 0
      %1315 = vmatprep.subr.bf16.mxu0 0
      %1316 = vmatpush1.bf16.msra.mxu0 0
      %1317 = vmatprep.subr.bf16.mxu0 0
      %1318 = vmatpush1.bf16.msra.mxu0 0
      %1319 = vmatprep.subr.bf16.mxu0 0
      %1320 = vmatpush1.bf16.msra.mxu0 0
      %1321 = vmatprep.subr.bf16.mxu0 0
      %1322 = vmatpush1.bf16.msra.mxu0 0
      %1323 = vmatprep.subr.bf16.mxu0 0
      %1324 = vmatpush1.bf16.msra.mxu0 0
      %1325 = vmatprep.subr.bf16.mxu0 0
      %1326 = vmatpush1.bf16.msra.mxu0 0
      %1327 = vmatprep.subr.bf16.mxu0 0
      %1328 = vmatpush1.bf16.msra.mxu0 0
      %1329 = vmatprep.mubr.bf16.mxu0 0
      %1330 = vmatmul.mubr.bf16.gmra.mrb[0].mxu0 %v1245
      %v1331 = vpop.f32.mrb[0].mxu0
      %v1332 = vadd.f32 0.0, %v1331
      %v1333 = vpop.f32.mrb[0].mxu0
      %v1334 = vpop.f32.mrb[0].mxu0
      %v1335 = vpop.f32.mrb[0].mxu0
      %1336 = vdwg.mxu0
      %v1337 = vadd.f32 %v1212, %v1291
      %v1338 = vadd.f32 %v1213, %v1293
      %v1339 = vadd.f32 %v1214, %v1332
      %v1340 = vpack.c.bf16 %v1337, %v1337
      %v1341 = vpack.c.bf16 %v1338, %v1338
      %v1342 = vpack.c.bf16 %v1339, %v1339
      %v1346 = vunpack.c.l.b16 %v1340
      %v1347 = vunpack.c.l.b16 %v1341
      %v1348 = vunpack.c.l.b16 %v1342
      %v1349 = vpack.c.b16 %v1347, %v1346
      %v1350 = vpack.c.b16 %v1348, %v1348
      %1353 = vst [vmem:[%s237] sm:$0xff] %v1349
      %vm1354 = vcmask 257024
      %1355 = vst.msk [vmem:[%s237 + $0x8] sm:$0xf] %vm1354, %v1350
      %v1356 = vld [vmem:[%s2] sm:$0x7]
      %v1358 = vlaneseq
      %v1359 = vshrl.u32 %v1358, 7
      %v1360 = vsub.s32 0, %v1359
      %v1361 = vrot.slane %v1356, %v1360
      %v1362 = vlaneseq
      %v1363 = vshrl.u32 %v1362, 7
      %v1364 = vsub.s32 1, %v1363
      %v1365 = vrot.slane %v1356, %v1364
      %v1366 = vlaneseq
      %v1367 = vshrl.u32 %v1366, 7
      %v1368 = vsub.s32 2, %v1367
      %v1369 = vrot.slane %v1356, %v1368
      %v1373 = vmul.f32 %v1337, %v1361
      %v1374 = vmul.f32 %v1338, %v1365
      %v1375 = vmul.f32 %v1339, %v1369
      %v1376 = vadd.f32 %v1373, %v1374
      %vm1377 = vcmask 261120
      %v1378 = vsel %vm1377, %v1375, 0.0
      %v1379 = vadd.f32 %v1376, %v1378
      %1380 = vadd.xlane.f32.xlu0 %v1379
      %v1381 = vpop.xlane.xlu0 %1380
      %vm1382 = vcmask 7168
      %1383 = vst.msk [vmem:[%s241] sm:$0xff] %vm1382, %v1381
      %v1384 = vmul.f32 %v1373, %v1337
      %v1385 = vmul.f32 %v1374, %v1338
      %v1386 = vmul.f32 %v1375, %v1339
      %v1387 = vadd.f32 %v1384, %v1385
      %v1388 = vsel %vm1377, %v1386, 0.0
      %v1389 = vadd.f32 %v1387, %v1388
      %1390 = vadd.xlane.f32.xlu0 %v1389
      %v1391 = vpop.xlane.xlu0 %1390
      %1392 = vst.msk [vmem:[%s245] sm:$0xff] %vm1382, %v1391
      %p1393 = scmp.lt.s32.totalorder %s17, 1
      %s1394 = scalar_select %p1393, %s17, 1
      %s1395 = smul.addr %s1394, 3
      %s1396 = smul.addr %s1395, 4
      %s1397 = scalar_lea.vmem %s3, %s1396
      %p1398 = scmp.lt.s32.totalorder %s17, 1
      %s1399 = scalar_select %p1398, %s17, 1
      %s1400 = smul.addr %s1399, 8
      %s1401 = scalar_lea.vmem %s4, %s1400
      %p1402 = scmp.lt.s32.totalorder %s17, 1
      %s1403 = scalar_select %p1402, %s17, 1
      %s1404 = smul.addr %s1403, 8
      %s1405 = scalar_lea.vmem %s5, %s1404
      // Predicated region
      $region33: #{cnn_block_forward.2} parent=31 // pred_check
        %p1406 = pneg %p103
      $region34: #{cnn_block_forward.2} parent=31 // pred_check_branch
        %1408 = sbr.rel (%p1406) target = $region36
      $region35: #{cnn_block_forward.2} parent=31 // pred_region
        _
      $region36: #{cnn_block_forward.2} parent=31 // pred_fallthru
        _
      // Predicated region
      $region37: #{cnn_block_forward.2} parent=31 // pred_check
        %p1409 = pneg %p129
      $region38: #{cnn_block_forward.2} parent=31 // pred_check_branch
        %1411 = sbr.rel (%p1409) target = $region40
      $region39: #{cnn_block_forward.2} parent=31 // pred_region
        _
      $region40: #{cnn_block_forward.2} parent=31 // pred_fallthru
        _
      // Predicated region
      $region41: #{cnn_block_forward.2} parent=31 // pred_check
        %p1412 = pneg %p155
      $region42: #{cnn_block_forward.2} parent=31 // pred_check_branch
        %1414 = sbr.rel (%p1412) target = $region44
      $region43: #{cnn_block_forward.2} parent=31 // pred_region
        _
      $region44: #{cnn_block_forward.2} parent=31 // pred_fallthru
        _
    $region32: #{cnn_block_forward.2} parent=5 // pred_fallthru
      _
    %p1415 = scmp.le.s32.totalorder 2, %s12
    // Predicated region
    $region45: #{cnn_block_forward.2} parent=5 // pred_check
      %p1416 = pneg %p1415
    $region46: #{cnn_block_forward.2} parent=5 // pred_check_branch
      %1418 = sbr.rel (%p1416) target = $region48
    $region47: #{cnn_block_forward.2} parent=5 // pred_region
      %s1419 = ssub.s32 %s12, 2
      // Predicated region
      $region49: #{cnn_block_forward.2} parent=47 // pred_check
        %p1420 = pneg %p109
      $region50: #{cnn_block_forward.2} parent=47 // pred_check_branch
        %1422 = sbr.rel (%p1420) target = $region52
      $region51: #{cnn_block_forward.2} parent=47 // pred_region
        %p1423 = scmp.lt.s32.totalorder %s18, 1
        %s1424 = scalar_select %p1423, %s18, 1
        %s1425 = smul.addr %s1424, 3
        %s1426 = smul.addr %s1425, 4
        %s1427 = scalar_lea.vmem %s3, %s1426
      $region52: #{cnn_block_forward.2} parent=47 // pred_fallthru
        _
      // Predicated region
      $region53: #{cnn_block_forward.2} parent=47 // pred_check
        %p1428 = pneg %p135
      $region54: #{cnn_block_forward.2} parent=47 // pred_check_branch
        %1430 = sbr.rel (%p1428) target = $region56
      $region55: #{cnn_block_forward.2} parent=47 // pred_region
        %p1431 = scmp.lt.s32.totalorder %s18, 1
        %s1432 = scalar_select %p1431, %s18, 1
        %s1433 = smul.addr %s1432, 8
        %s1434 = scalar_lea.vmem %s4, %s1433
      $region56: #{cnn_block_forward.2} parent=47 // pred_fallthru
        _
      // Predicated region
      $region57: #{cnn_block_forward.2} parent=47 // pred_check
        %p1435 = pneg %p161
      $region58: #{cnn_block_forward.2} parent=47 // pred_check_branch
        %1437 = sbr.rel (%p1435) target = $region60
      $region59: #{cnn_block_forward.2} parent=47 // pred_region
        %p1438 = scmp.lt.s32.totalorder %s18, 1
        %s1439 = scalar_select %p1438, %s18, 1
        %s1440 = smul.addr %s1439, 8
        %s1441 = scalar_lea.vmem %s5, %s1440
      $region60: #{cnn_block_forward.2} parent=47 // pred_fallthru
        _
    $region48: #{cnn_block_forward.2} parent=5 // pred_fallthru
      _
  $region6: #{cnn_block_forward.2} parent=0 // loop_footer
    %s16 = sadd.s32 1, %s12
  $region7: #{cnn_block_forward.2} parent=0 // loop_footer_branch
    %11 = sbr.rel target = $region3
  $region8: #{cnn_block_forward.2} parent=0 // loop_exit
    _

</llo_original>
